<compile_context>
chip_gen: v5e
topology: v5e:2x2
jax: 0.10.0
libtpu: 0.0.40
codegen_flags: <defaults>
</compile_context>

<pallas_src>
import functools

import jax
import jax.numpy as jnp
from jax.experimental import pallas as pl
from jax.experimental.pallas import tpu as pltpu


def _round_up(x, m):
    return ((x + m - 1) // m) * m


def _cdiv(a, b):
    return -(-a // b)


def _leaky_relu(x, negative_slope=0.01):
    # Equivalent to torch.nn.LeakyReLU() (slope 0.01) for slope in (0, 1).
    return jnp.maximum(x, negative_slope * x)


def _lossnet_dfl_kernel(
    x_ref,                       # (2, TB, in)  stacked [xref; xper] tile
    w0_ref, b0_ref, c0_ref,      # layer 0: (in, 256), (1, 256), (1, 256)
    w1_ref, b1_ref, c1_ref,      # layer 1: (256, 64), (1, 64), (1, 64)
    w2_ref, b2_ref, c2_ref,      # layer 2: (64, 16), (1, 16), (1, 16)
    w3_ref,                      # layer 3: (16, 4) with chan_w (and 1/fout) folded in
    out_ref,                     # (TB, 1)
    *, matmul_dtype,
):
    tb = x_ref.shape[1]
    in_dim = x_ref.shape[2]

    # TB is a multiple of 128 (>= sublane tile for f32/bf16), so merging the
    # leading stream dim into the row dim is a layout-preserving (free) reshape.
    x = x_ref[...].reshape(2 * tb, in_dim)

    dist = jnp.zeros((tb, 1), jnp.float32)
    diff = None
    for w_ref, b_ref, c_ref in ((w0_ref, b0_ref, c0_ref),
                                (w1_ref, b1_ref, c1_ref),
                                (w2_ref, b2_ref, c2_ref)):
        # One MXU matmul per layer for both streams; f32 accumulate.
        y = jnp.dot(x, w_ref[...], preferred_element_type=jnp.float32)
        y = _leaky_relu(y + b_ref[...])
        # diff = f(xper) - f(xref); split at a 128-aligned row offset.
        diff = y[tb:, :] - y[:tb, :]
        dist = dist + jnp.sum(jnp.abs(diff * c_ref[...]), axis=1, keepdims=True)
        x = y.astype(matmul_dtype)   # next layer's stacked input

    # Last layer (16 -> 4): no activation, so its bias cancels inside the diff
    # and chan_w / avg_channel scaling are pre-folded into w3's columns.
    d3 = jnp.dot(diff.astype(matmul_dtype), w3_ref[...],
                 preferred_element_type=jnp.float32)
    dist = dist + jnp.sum(jnp.abs(d3), axis=1, keepdims=True)

    out_ref[...] = dist


def lossnet_dfl_forward(xref, xper, params, avg_channel=0, *,
                        matmul_dtype=jnp.bfloat16, tile_b=1024,
                        vmem_limit_bytes=32 * 1024 * 1024):
    """params: list of 4 tuples (W[in,out], b[out], chan_w[out]).

    W is stored pre-transposed vs. torch.nn.Linear, i.e. (in, out), so the
    kernel computes y = x @ W + b on the MXU.  matmul_dtype=jnp.bfloat16 uses
    the fast MXU path (f32 accumulate); pass jnp.float32 for exact numerics.
    """
    B, in_dim = xref.shape

    # ---- tile sizing -------------------------------------------------------
    # 128-row granularity (sublane/lane friendly for both f32 and bf16).
    # Balance tile size against B so padding waste stays < ~128 rows, and use
    # >= 2 tiles for larger batches so both v7x TensorCores get work.
    tb_req = max(128, _round_up(min(tile_b, B), 128))
    num_tiles = _cdiv(B, tb_req)
    if num_tiles == 1 and B >= 256:
        num_tiles = 2
    tb = max(128, _round_up(_cdiv(B, num_tiles), 128))
    padded_b = num_tiles * tb

    # ---- inputs: stack the two streams once, cast once, pad once ----------
    # Padded rows are zero for both streams -> identical activations -> zero
    # diff contribution; they are sliced off at the end anyway.
    x2 = jnp.stack([xref, xper], axis=0).astype(matmul_dtype)
    if padded_b != B:
        x2 = jnp.pad(x2, ((0, 0), (0, padded_b - B), (0, 0)))

    # ---- parameters: hoist casts and folds out of the per-tile trace ------
    flat_args = []
    in_specs = [pl.BlockSpec((2, tb, in_dim), lambda i: (0, i, 0))]
    for li, (w, b, cw) in enumerate(params):
        fin, fout = w.shape
        cw_eff = cw.astype(jnp.float32).reshape(1, fout)
        if avg_channel == 1:
            cw_eff = cw_eff * jnp.float32(1.0 / fout)   # |d*cw|/N == |d*cw/N|
        if li == 3:
            # Bias cancels in the diff; fold chan_w (and avg scale) into W.
            w_eff = (w.astype(jnp.float32) * cw_eff).astype(matmul_dtype)
            flat_args.append(w_eff)
            in_specs.append(pl.BlockSpec((fin, fout), lambda i: (0, 0)))
        else:
            flat_args.append(w.astype(matmul_dtype))
            flat_args.append(b.astype(jnp.float32).reshape(1, fout))
            flat_args.append(cw_eff)
            in_specs.append(pl.BlockSpec((fin, fout), lambda i: (0, 0)))
            in_specs.append(pl.BlockSpec((1, fout), lambda i: (0, 0)))
            in_specs.append(pl.BlockSpec((1, fout), lambda i: (0, 0)))

    out = pl.pallas_call(
        functools.partial(_lossnet_dfl_kernel, matmul_dtype=matmul_dtype),
        out_shape=jax.ShapeDtypeStruct((padded_b, 1), jnp.float32),
        grid_spec=pltpu.PrefetchScalarGridSpec(
            num_scalar_prefetch=0,
            grid=(num_tiles,),
            in_specs=in_specs,
            out_specs=pl.BlockSpec((tb, 1), lambda i: (i, 0)),
        ),
        compiler_params=pltpu.CompilerParams(
            dimension_semantics=("parallel",),
            vmem_limit_bytes=vmem_limit_bytes,
        ),
    )(x2, *flat_args)

    return out[:B, 0]   # matches torch: dist has shape (B,)


def make_params(key, input_size):
    """Deterministic synthetic parameters matching lossnet_dfl.__init__ shapes."""
    sizes = [(input_size, 256), (256, 64), (64, 16), (16, 4)]
    params = []
    for (fin, fout) in sizes:
        key, kw, kb, kc = jax.random.split(key, 4)
        w = jax.random.normal(kw, (fin, fout), jnp.float32) * 0.05
        b = jax.random.normal(kb, (fout,), jnp.float32) * 0.05
        cw = jax.random.normal(kc, (fout,), jnp.float32)   # torch.randn(fout)
        params.append((w, b, cw))
    return params


def reference_forward(xref, xper, params, avg_channel=0):
    """Pure-JAX reference mirroring the PyTorch forward (full-f32 matmuls)."""
    dist = 0.0
    for i, (w, b, cw) in enumerate(params):
        xref = jnp.dot(xref, w, precision=jax.lax.Precision.HIGHEST) + b
        xper = jnp.dot(xper, w, precision=jax.lax.Precision.HIGHEST) + b
        if i < 3:
            xref = _leaky_relu(xref)
            xper = _leaky_relu(xper)
        diff = xper - xref
        wdiff = jnp.sum(jnp.abs(diff * cw), axis=1)
        if avg_channel == 1:
            wdiff = wdiff / diff.shape[1]
        dist = dist + wdiff
    return dist


if __name__ == "__main__":
    key = jax.random.PRNGKey(0)
    INPUT_SIZE = 32

    k_params, k_ref, k_per, k_ref2, k_per2 = jax.random.split(key, 5)
    params = make_params(k_params, INPUT_SIZE)

    # --- small batch, single-tile grid, f32 matmuls (exact-path check) ---
    B = 8
    xref = jax.random.normal(k_ref, (B, INPUT_SIZE), jnp.float32)
    xper = jax.random.normal(k_per, (B, INPUT_SIZE), jnp.float32)

    dist = jax.block_until_ready(
        lossnet_dfl_forward(xref, xper, params, avg_channel=0,
                            matmul_dtype=jnp.float32))
    ref = reference_forward(xref, xper, params, avg_channel=0)
    assert dist.shape == (B,)
    assert jnp.allclose(dist, ref, rtol=2e-3, atol=2e-3), (dist, ref)

    dist_avg = jax.block_until_ready(
        lossnet_dfl_forward(xref, xper, params, avg_channel=1,
                            matmul_dtype=jnp.float32))
    ref_avg = reference_forward(xref, xper, params, avg_channel=1)
    assert jnp.allclose(dist_avg, ref_avg, rtol=2e-3, atol=2e-3), (dist_avg, ref_avg)

    # --- larger, non-tile-multiple batch: padding + multi-tile grid, f32 ---
    B2 = 200
    xref2 = jax.random.normal(k_ref2, (B2, INPUT_SIZE), jnp.float32)
    xper2 = jax.random.normal(k_per2, (B2, INPUT_SIZE), jnp.float32)
    dist2 = jax.block_until_ready(
        lossnet_dfl_forward(xref2, xper2, params, avg_channel=0,
                            matmul_dtype=jnp.float32, tile_b=64))
    ref2 = reference_forward(xref2, xper2, params, avg_channel=0)
    assert dist2.shape == (B2,)
    assert jnp.allclose(dist2, ref2, rtol=2e-3, atol=2e-3)

    # --- default path: bf16 MXU matmuls, f32 accumulate (looser tolerance) ---
    dist_bf16 = jax.block_until_ready(
        lossnet_dfl_forward(xref2, xper2, params, avg_channel=0))
    assert jnp.allclose(dist_bf16, ref2, rtol=1e-1, atol=1e-1)

    print("KERNEL_OK")
</pallas_src>

<mosaic_0001>
module attributes {stable_mosaic.version = 11 : i64} {
  func.func @_lossnet_dfl_kernel(%arg0: i32, %arg1: memref<2x128x32xf32, #tpu.memory_space<vmem>>, %arg2: memref<32x256xf32, #tpu.memory_space<vmem>>, %arg3: memref<1x256xf32, #tpu.memory_space<vmem>>, %arg4: memref<1x256xf32, #tpu.memory_space<vmem>>, %arg5: memref<256x64xf32, #tpu.memory_space<vmem>>, %arg6: memref<1x64xf32, #tpu.memory_space<vmem>>, %arg7: memref<1x64xf32, #tpu.memory_space<vmem>>, %arg8: memref<64x16xf32, #tpu.memory_space<vmem>>, %arg9: memref<1x16xf32, #tpu.memory_space<vmem>>, %arg10: memref<1x16xf32, #tpu.memory_space<vmem>>, %arg11: memref<16x4xf32, #tpu.memory_space<vmem>>, %arg12: memref<128x1xf32, #tpu.memory_space<vmem>>) attributes {dimension_semantics = [#tpu.dimension_semantics<parallel>], iteration_bounds = array<i64: 1>, scalar_prefetch = 0 : i64, scratch_operands = 0 : i64, tpu.core_type = #tpu.core_type<tc>, window_params = [{transform_indices = @transform_0, window_bounds = array<i64: 2, 128, 32>}, {pipeline_mode = #tpu.pipeline_mode<synchronous>, transform_indices = @transform_1, window_bounds = array<i64: 32, 256>}, {pipeline_mode = #tpu.pipeline_mode<synchronous>, transform_indices = @transform_2, window_bounds = array<i64: 1, 256>}, {pipeline_mode = #tpu.pipeline_mode<synchronous>, transform_indices = @transform_3, window_bounds = array<i64: 1, 256>}, {pipeline_mode = #tpu.pipeline_mode<synchronous>, transform_indices = @transform_4, window_bounds = array<i64: 256, 64>}, {pipeline_mode = #tpu.pipeline_mode<synchronous>, transform_indices = @transform_5, window_bounds = array<i64: 1, 64>}, {pipeline_mode = #tpu.pipeline_mode<synchronous>, transform_indices = @transform_6, window_bounds = array<i64: 1, 64>}, {pipeline_mode = #tpu.pipeline_mode<synchronous>, transform_indices = @transform_7, window_bounds = array<i64: 64, 16>}, {pipeline_mode = #tpu.pipeline_mode<synchronous>, transform_indices = @transform_8, window_bounds = array<i64: 1, 16>}, {pipeline_mode = #tpu.pipeline_mode<synchronous>, transform_indices = @transform_9, window_bounds = array<i64: 1, 16>}, {pipeline_mode = #tpu.pipeline_mode<synchronous>, transform_indices = @transform_10, window_bounds = array<i64: 16, 4>}, {transform_indices = @transform_11, window_bounds = array<i64: 128, 1>}]} {
    %c0 = arith.constant 0 : index
    %c0_0 = arith.constant 0 : index
    %c0_1 = arith.constant 0 : index
    %0 = vector.load %arg1[%c0, %c0_0, %c0_1] : memref<2x128x32xf32, #tpu.memory_space<vmem>>, vector<2x128x32xf32>
    %1 = vector.shape_cast %0 : vector<2x128x32xf32> to vector<256x32xf32>
    %cst = arith.constant 0.000000e+00 : f32
    %2 = vector.broadcast %cst : f32 to vector<128x1xf32>
    %c0_2 = arith.constant 0 : index
    %c0_3 = arith.constant 0 : index
    %3 = vector.load %arg2[%c0_2, %c0_3] : memref<32x256xf32, #tpu.memory_space<vmem>>, vector<32x256xf32>
    %cst_4 = arith.constant dense<0.000000e+00> : vector<256x256xf32>
    %4 = tpu.matmul %1, %3, %cst_4 {dimension_numbers = #tpu.dot_dimension_numbers<[1], [0], [0], [1], [0, 0, 1, 1], [], []>} : vector<256x32xf32>, vector<32x256xf32>, vector<256x256xf32> -> vector<256x256xf32>
    %c0_5 = arith.constant 0 : index
    %c0_6 = arith.constant 0 : index
    %5 = vector.load %arg3[%c0_5, %c0_6] : memref<1x256xf32, #tpu.memory_space<vmem>>, vector<1x256xf32>
    %6 = vector.broadcast %5 : vector<1x256xf32> to vector<256x256xf32>
    %7 = arith.addf %4, %6 : vector<256x256xf32>
    %cst_7 = arith.constant 0.00999999977 : f32
    %8 = vector.broadcast %cst_7 : f32 to vector<256x256xf32>
    %9 = arith.mulf %8, %7 : vector<256x256xf32>
    %10 = arith.maximumf %7, %9 : vector<256x256xf32>
    %11 = vector.extract_strided_slice %10 {offsets = [128, 0], sizes = [128, 256], strides = [1, 1]} : vector<256x256xf32> to vector<128x256xf32>
    %12 = vector.extract_strided_slice %10 {offsets = [0, 0], sizes = [128, 256], strides = [1, 1]} : vector<256x256xf32> to vector<128x256xf32>
    %13 = arith.subf %11, %12 : vector<128x256xf32>
    %c0_8 = arith.constant 0 : index
    %c0_9 = arith.constant 0 : index
    %14 = vector.load %arg4[%c0_8, %c0_9] : memref<1x256xf32, #tpu.memory_space<vmem>>, vector<1x256xf32>
    %15 = vector.broadcast %14 : vector<1x256xf32> to vector<128x256xf32>
    %16 = arith.mulf %13, %15 : vector<128x256xf32>
    %17 = math.absf %16 : vector<128x256xf32>
    %cst_10 = arith.constant dense<0.000000e+00> : vector<128xf32>
    %18 = vector.multi_reduction <add>, %17, %cst_10 [1] : vector<128x256xf32> to vector<128xf32>
    %19 = vector.shape_cast %18 : vector<128xf32> to vector<128x1xf32>
    %20 = arith.addf %2, %19 : vector<128x1xf32>
    %c0_11 = arith.constant 0 : index
    %c0_12 = arith.constant 0 : index
    %21 = vector.load %arg5[%c0_11, %c0_12] : memref<256x64xf32, #tpu.memory_space<vmem>>, vector<256x64xf32>
    %cst_13 = arith.constant dense<0.000000e+00> : vector<256x64xf32>
    %22 = tpu.matmul %10, %21, %cst_13 {dimension_numbers = #tpu.dot_dimension_numbers<[1], [0], [0], [1], [0, 0, 1, 1], [], []>} : vector<256x256xf32>, vector<256x64xf32>, vector<256x64xf32> -> vector<256x64xf32>
    %c0_14 = arith.constant 0 : index
    %c0_15 = arith.constant 0 : index
    %23 = vector.load %arg6[%c0_14, %c0_15] : memref<1x64xf32, #tpu.memory_space<vmem>>, vector<1x64xf32>
    %24 = vector.broadcast %23 : vector<1x64xf32> to vector<256x64xf32>
    %25 = arith.addf %22, %24 : vector<256x64xf32>
    %cst_16 = arith.constant 0.00999999977 : f32
    %26 = vector.broadcast %cst_16 : f32 to vector<256x64xf32>
    %27 = arith.mulf %26, %25 : vector<256x64xf32>
    %28 = arith.maximumf %25, %27 : vector<256x64xf32>
    %29 = vector.extract_strided_slice %28 {offsets = [128, 0], sizes = [128, 64], strides = [1, 1]} : vector<256x64xf32> to vector<128x64xf32>
    %30 = vector.extract_strided_slice %28 {offsets = [0, 0], sizes = [128, 64], strides = [1, 1]} : vector<256x64xf32> to vector<128x64xf32>
    %31 = arith.subf %29, %30 : vector<128x64xf32>
    %c0_17 = arith.constant 0 : index
    %c0_18 = arith.constant 0 : index
    %32 = vector.load %arg7[%c0_17, %c0_18] : memref<1x64xf32, #tpu.memory_space<vmem>>, vector<1x64xf32>
    %33 = vector.broadcast %32 : vector<1x64xf32> to vector<128x64xf32>
    %34 = arith.mulf %31, %33 : vector<128x64xf32>
    %35 = math.absf %34 : vector<128x64xf32>
    %cst_19 = arith.constant dense<0.000000e+00> : vector<128xf32>
    %36 = vector.multi_reduction <add>, %35, %cst_19 [1] : vector<128x64xf32> to vector<128xf32>
    %37 = vector.shape_cast %36 : vector<128xf32> to vector<128x1xf32>
    %38 = arith.addf %20, %37 : vector<128x1xf32>
    %c0_20 = arith.constant 0 : index
    %c0_21 = arith.constant 0 : index
    %39 = vector.load %arg8[%c0_20, %c0_21] : memref<64x16xf32, #tpu.memory_space<vmem>>, vector<64x16xf32>
    %cst_22 = arith.constant dense<0.000000e+00> : vector<256x16xf32>
    %40 = tpu.matmul %28, %39, %cst_22 {dimension_numbers = #tpu.dot_dimension_numbers<[1], [0], [0], [1], [0, 0, 1, 1], [], []>} : vector<256x64xf32>, vector<64x16xf32>, vector<256x16xf32> -> vector<256x16xf32>
    %c0_23 = arith.constant 0 : index
    %c0_24 = arith.constant 0 : index
    %41 = vector.load %arg9[%c0_23, %c0_24] : memref<1x16xf32, #tpu.memory_space<vmem>>, vector<1x16xf32>
    %42 = vector.broadcast %41 : vector<1x16xf32> to vector<256x16xf32>
    %43 = arith.addf %40, %42 : vector<256x16xf32>
    %cst_25 = arith.constant 0.00999999977 : f32
    %44 = vector.broadcast %cst_25 : f32 to vector<256x16xf32>
    %45 = arith.mulf %44, %43 : vector<256x16xf32>
    %46 = arith.maximumf %43, %45 : vector<256x16xf32>
    %47 = vector.extract_strided_slice %46 {offsets = [128, 0], sizes = [128, 16], strides = [1, 1]} : vector<256x16xf32> to vector<128x16xf32>
    %48 = vector.extract_strided_slice %46 {offsets = [0, 0], sizes = [128, 16], strides = [1, 1]} : vector<256x16xf32> to vector<128x16xf32>
    %49 = arith.subf %47, %48 : vector<128x16xf32>
    %c0_26 = arith.constant 0 : index
    %c0_27 = arith.constant 0 : index
    %50 = vector.load %arg10[%c0_26, %c0_27] : memref<1x16xf32, #tpu.memory_space<vmem>>, vector<1x16xf32>
    %51 = vector.broadcast %50 : vector<1x16xf32> to vector<128x16xf32>
    %52 = arith.mulf %49, %51 : vector<128x16xf32>
    %53 = math.absf %52 : vector<128x16xf32>
    %cst_28 = arith.constant dense<0.000000e+00> : vector<128xf32>
    %54 = vector.multi_reduction <add>, %53, %cst_28 [1] : vector<128x16xf32> to vector<128xf32>
    %55 = vector.shape_cast %54 : vector<128xf32> to vector<128x1xf32>
    %56 = arith.addf %38, %55 : vector<128x1xf32>
    %c0_29 = arith.constant 0 : index
    %c0_30 = arith.constant 0 : index
    %57 = vector.load %arg11[%c0_29, %c0_30] : memref<16x4xf32, #tpu.memory_space<vmem>>, vector<16x4xf32>
    %cst_31 = arith.constant dense<0.000000e+00> : vector<128x4xf32>
    %58 = tpu.matmul %49, %57, %cst_31 {dimension_numbers = #tpu.dot_dimension_numbers<[1], [0], [0], [1], [0, 0, 1, 1], [], []>} : vector<128x16xf32>, vector<16x4xf32>, vector<128x4xf32> -> vector<128x4xf32>
    %59 = math.absf %58 : vector<128x4xf32>
    %cst_32 = arith.constant dense<0.000000e+00> : vector<128xf32>
    %60 = vector.multi_reduction <add>, %59, %cst_32 [1] : vector<128x4xf32> to vector<128xf32>
    %61 = vector.shape_cast %60 : vector<128xf32> to vector<128x1xf32>
    %62 = arith.addf %56, %61 : vector<128x1xf32>
    %c0_33 = arith.constant 0 : index
    %c0_34 = arith.constant 0 : index
    %63 = vector.load %arg12[%c0_33, %c0_34] : memref<128x1xf32, #tpu.memory_space<vmem>>, vector<128x1xf32>
    tpu.vector_store %arg12[%c0_33, %c0_34], %62 {strides = array<i32>} : memref<128x1xf32, #tpu.memory_space<vmem>>, vector<128x1xf32>,
    return
  }
  func.func @transform_0(%arg0: i32) -> (i32, i32, i32) {
    %c0_i32 = arith.constant 0 : i32
    %c0_i32_0 = arith.constant 0 : i32
    %c0_i32_1 = arith.constant 0 : i32
    return %c0_i32, %arg0, %c0_i32_0 : i32, i32, i32
  }
  func.func @transform_1(%arg0: i32) -> (i32, i32) {
    %c0_i32 = arith.constant 0 : i32
    %c0_i32_0 = arith.constant 0 : i32
    %c0_i32_1 = arith.constant 0 : i32
    return %c0_i32, %c0_i32_0 : i32, i32
  }
  func.func @transform_2(%arg0: i32) -> (i32, i32) {
    %c0_i32 = arith.constant 0 : i32
    %c0_i32_0 = arith.constant 0 : i32
    %c0_i32_1 = arith.constant 0 : i32
    return %c0_i32, %c0_i32_0 : i32, i32
  }
  func.func @transform_3(%arg0: i32) -> (i32, i32) {
    %c0_i32 = arith.constant 0 : i32
    %c0_i32_0 = arith.constant 0 : i32
    %c0_i32_1 = arith.constant 0 : i32
    return %c0_i32, %c0_i32_0 : i32, i32
  }
  func.func @transform_4(%arg0: i32) -> (i32, i32) {
    %c0_i32 = arith.constant 0 : i32
    %c0_i32_0 = arith.constant 0 : i32
    %c0_i32_1 = arith.constant 0 : i32
    return %c0_i32, %c0_i32_0 : i32, i32
  }
  func.func @transform_5(%arg0: i32) -> (i32, i32) {
    %c0_i32 = arith.constant 0 : i32
    %c0_i32_0 = arith.constant 0 : i32
    %c0_i32_1 = arith.constant 0 : i32
    return %c0_i32, %c0_i32_0 : i32, i32
  }
  func.func @transform_6(%arg0: i32) -> (i32, i32) {
    %c0_i32 = arith.constant 0 : i32
    %c0_i32_0 = arith.constant 0 : i32
    %c0_i32_1 = arith.constant 0 : i32
    return %c0_i32, %c0_i32_0 : i32, i32
  }
  func.func @transform_7(%arg0: i32) -> (i32, i32) {
    %c0_i32 = arith.constant 0 : i32
    %c0_i32_0 = arith.constant 0 : i32
    %c0_i32_1 = arith.constant 0 : i32
    return %c0_i32, %c0_i32_0 : i32, i32
  }
  func.func @transform_8(%arg0: i32) -> (i32, i32) {
    %c0_i32 = arith.constant 0 : i32
    %c0_i32_0 = arith.constant 0 : i32
    %c0_i32_1 = arith.constant 0 : i32
    return %c0_i32, %c0_i32_0 : i32, i32
  }
  func.func @transform_9(%arg0: i32) -> (i32, i32) {
    %c0_i32 = arith.constant 0 : i32
    %c0_i32_0 = arith.constant 0 : i32
    %c0_i32_1 = arith.constant 0 : i32
    return %c0_i32, %c0_i32_0 : i32, i32
  }
  func.func @transform_10(%arg0: i32) -> (i32, i32) {
    %c0_i32 = arith.constant 0 : i32
    %c0_i32_0 = arith.constant 0 : i32
    %c0_i32_1 = arith.constant 0 : i32
    return %c0_i32, %c0_i32_0 : i32, i32
  }
  func.func @transform_11(%arg0: i32) -> (i32, i32) {
    %c0_i32 = arith.constant 0 : i32
    %c0_i32_0 = arith.constant 0 : i32
    return %arg0, %c0_i32 : i32, i32
  }
}

</mosaic_0001>

<llo_original>
// kernel: tpu_custom_call.1
$region0: #{tpu_custom_call.1}
  #allocation0 [shape = 'u32[]', space=smem, size = 0x4, offset = 0x4, fixed_abs, tag = 'smem constant byte address 0x4 - core index']
  #allocation1 [shape = 'u32[72,128]{1,0:T(1,128)}', space=vmem, size = 0x9000, scoped, tag = 'internal scratch']
  %s0 = inlined_call_operand.vmem [shape: f32[2,128,32], index: 0, kind: input, shape index: {}]
  %s1 = inlined_call_operand.vmem [shape: f32[32,256], index: 1, kind: input, shape index: {}]
  %s2 = inlined_call_operand.vmem [shape: f32[1,256], index: 2, kind: input, shape index: {}]
  %s3 = inlined_call_operand.vmem [shape: f32[1,256], index: 3, kind: input, shape index: {}]
  %s4 = inlined_call_operand.vmem [shape: f32[256,64], index: 4, kind: input, shape index: {}]
  %s5 = inlined_call_operand.vmem [shape: f32[1,64], index: 5, kind: input, shape index: {}]
  %s6 = inlined_call_operand.vmem [shape: f32[1,64], index: 6, kind: input, shape index: {}]
  %s7 = inlined_call_operand.vmem [shape: f32[64,16], index: 7, kind: input, shape index: {}]
  %s8 = inlined_call_operand.vmem [shape: f32[1,16], index: 8, kind: input, shape index: {}]
  %s9 = inlined_call_operand.vmem [shape: f32[1,16], index: 9, kind: input, shape index: {}]
  %s10 = inlined_call_operand.vmem [shape: f32[16,4], index: 10, kind: input, shape index: {}]
  %s11 = inlined_call_operand.vmem [shape: f32[128,1], index: 11, kind: output, shape index: {}]
  %s12 = sld [smem:[#allocation0]]
  $region54: #{tpu_custom_call.1} parent=0
    _
  %s14 = ssub.s32 1, %s12
  %s15 = scalar_select 0, %s14, %s12
  // Predicated region
  $region2: #{tpu_custom_call.1} parent=0 // pred_check
    _
  $region3: #{tpu_custom_call.1} parent=0 // pred_check_branch
    %17 = sbr.rel (0) target = $region5
  $region4: #{tpu_custom_call.1} parent=0 // pred_region
    _
  $region5: #{tpu_custom_call.1} parent=0 // pred_fallthru
    _
  // Predicated region
  $region6: #{tpu_custom_call.1} parent=0 // pred_check
    _
  $region7: #{tpu_custom_call.1} parent=0 // pred_check_branch
    %19 = sbr.rel (0) target = $region9
  $region8: #{tpu_custom_call.1} parent=0 // pred_region
    _
  $region9: #{tpu_custom_call.1} parent=0 // pred_fallthru
    _
  // Predicated region
  $region10: #{tpu_custom_call.1} parent=0 // pred_check
    _
  $region11: #{tpu_custom_call.1} parent=0 // pred_check_branch
    %21 = sbr.rel (0) target = $region13
  $region12: #{tpu_custom_call.1} parent=0 // pred_region
    _
  $region13: #{tpu_custom_call.1} parent=0 // pred_fallthru
    _
  // Predicated region
  $region14: #{tpu_custom_call.1} parent=0 // pred_check
    _
  $region15: #{tpu_custom_call.1} parent=0 // pred_check_branch
    %23 = sbr.rel (0) target = $region17
  $region16: #{tpu_custom_call.1} parent=0 // pred_region
    _
  $region17: #{tpu_custom_call.1} parent=0 // pred_fallthru
    _
  // Predicated region
  $region18: #{tpu_custom_call.1} parent=0 // pred_check
    _
  $region19: #{tpu_custom_call.1} parent=0 // pred_check_branch
    %25 = sbr.rel (0) target = $region21
  $region20: #{tpu_custom_call.1} parent=0 // pred_region
    _
  $region21: #{tpu_custom_call.1} parent=0 // pred_fallthru
    _
  // Predicated region
  $region22: #{tpu_custom_call.1} parent=0 // pred_check
    _
  $region23: #{tpu_custom_call.1} parent=0 // pred_check_branch
    %27 = sbr.rel (0) target = $region25
  $region24: #{tpu_custom_call.1} parent=0 // pred_region
    _
  $region25: #{tpu_custom_call.1} parent=0 // pred_fallthru
    _
  // Predicated region
  $region26: #{tpu_custom_call.1} parent=0 // pred_check
    _
  $region27: #{tpu_custom_call.1} parent=0 // pred_check_branch
    %29 = sbr.rel (0) target = $region29
  $region28: #{tpu_custom_call.1} parent=0 // pred_region
    _
  $region29: #{tpu_custom_call.1} parent=0 // pred_fallthru
    _
  // Predicated region
  $region30: #{tpu_custom_call.1} parent=0 // pred_check
    _
  $region31: #{tpu_custom_call.1} parent=0 // pred_check_branch
    %31 = sbr.rel (0) target = $region33
  $region32: #{tpu_custom_call.1} parent=0 // pred_region
    _
  $region33: #{tpu_custom_call.1} parent=0 // pred_fallthru
    _
  // Predicated region
  $region34: #{tpu_custom_call.1} parent=0 // pred_check
    _
  $region35: #{tpu_custom_call.1} parent=0 // pred_check_branch
    %33 = sbr.rel (0) target = $region37
  $region36: #{tpu_custom_call.1} parent=0 // pred_region
    _
  $region37: #{tpu_custom_call.1} parent=0 // pred_fallthru
    _
  // Predicated region
  $region38: #{tpu_custom_call.1} parent=0 // pred_check
    _
  $region39: #{tpu_custom_call.1} parent=0 // pred_check_branch
    %35 = sbr.rel (0) target = $region41
  $region40: #{tpu_custom_call.1} parent=0 // pred_region
    _
  $region41: #{tpu_custom_call.1} parent=0 // pred_fallthru
    _
  // Predicated region
  $region42: #{tpu_custom_call.1} parent=0 // pred_check
    _
  $region43: #{tpu_custom_call.1} parent=0 // pred_check_branch
    %37 = sbr.rel (0) target = $region45
  $region44: #{tpu_custom_call.1} parent=0 // pred_region
    _
  $region45: #{tpu_custom_call.1} parent=0 // pred_fallthru
    _
  %v38 = vld [vmem:[%s0] sm:$0xff]
  %v39 = vld [vmem:[%s0 + $0x8] sm:$0xff]
  %v40 = vld [vmem:[%s0 + $0x10] sm:$0xff]
  %v41 = vld [vmem:[%s0 + $0x18] sm:$0xff]
  %v42 = vld [vmem:[%s0 + $0x20] sm:$0xff]
  %v43 = vld [vmem:[%s0 + $0x28] sm:$0xff]
  %v44 = vld [vmem:[%s0 + $0x30] sm:$0xff]
  %v45 = vld [vmem:[%s0 + $0x38] sm:$0xff]
  %v46 = vld [vmem:[%s0 + $0x40] sm:$0xff]
  %v47 = vld [vmem:[%s0 + $0x48] sm:$0xff]
  %v48 = vld [vmem:[%s0 + $0x50] sm:$0xff]
  %v49 = vld [vmem:[%s0 + $0x58] sm:$0xff]
  %v50 = vld [vmem:[%s0 + $0x60] sm:$0xff]
  %v51 = vld [vmem:[%s0 + $0x68] sm:$0xff]
  %v52 = vld [vmem:[%s0 + $0x70] sm:$0xff]
  %v53 = vld [vmem:[%s0 + $0x78] sm:$0xff]
  %v54 = vld [vmem:[%s0 + $0x80] sm:$0xff]
  %v55 = vld [vmem:[%s0 + $0x88] sm:$0xff]
  %v56 = vld [vmem:[%s0 + $0x90] sm:$0xff]
  %v57 = vld [vmem:[%s0 + $0x98] sm:$0xff]
  %v58 = vld [vmem:[%s0 + $0xa0] sm:$0xff]
  %v59 = vld [vmem:[%s0 + $0xa8] sm:$0xff]
  %v60 = vld [vmem:[%s0 + $0xb0] sm:$0xff]
  %v61 = vld [vmem:[%s0 + $0xb8] sm:$0xff]
  %v62 = vld [vmem:[%s0 + $0xc0] sm:$0xff]
  %v63 = vld [vmem:[%s0 + $0xc8] sm:$0xff]
  %v64 = vld [vmem:[%s0 + $0xd0] sm:$0xff]
  %v65 = vld [vmem:[%s0 + $0xd8] sm:$0xff]
  %v66 = vld [vmem:[%s0 + $0xe0] sm:$0xff]
  %v67 = vld [vmem:[%s0 + $0xe8] sm:$0xff]
  %v68 = vld [vmem:[%s0 + $0xf0] sm:$0xff]
  %v69 = vld [vmem:[%s0 + $0xf8] sm:$0xff]
  %v70 = vld [vmem:[%s1] sm:$0xff]
  %v71 = vld [vmem:[%s1 + $0x8] sm:$0xff]
  %v72 = vld [vmem:[%s1 + $0x10] sm:$0xff]
  %v73 = vld [vmem:[%s1 + $0x18] sm:$0xff]
  %v74 = vld [vmem:[%s1 + $0x20] sm:$0xff]
  %v75 = vld [vmem:[%s1 + $0x28] sm:$0xff]
  %v76 = vld [vmem:[%s1 + $0x30] sm:$0xff]
  %v77 = vld [vmem:[%s1 + $0x38] sm:$0xff]
  %v78 = vld [vmem:[%s2] sm:$0x3]
  %v80 = vperm.slane %v78, 0
  %v81 = vperm.slane %v78, 1
  %vm84 = vcmask 261120
  %v86 = vsel %vm84, %v38, 0
  %v89 = vsel %vm84, %v39, 0
  %v92 = vsel %vm84, %v40, 0
  %v95 = vsel %vm84, %v41, 0
  %v98 = vsel %vm84, %v42, 0
  %v101 = vsel %vm84, %v43, 0
  %v104 = vsel %vm84, %v44, 0
  %v107 = vsel %vm84, %v45, 0
  %v110 = vsel %vm84, %v46, 0
  %v113 = vsel %vm84, %v47, 0
  %v116 = vsel %vm84, %v48, 0
  %v119 = vsel %vm84, %v49, 0
  %v122 = vsel %vm84, %v50, 0
  %v125 = vsel %vm84, %v51, 0
  %v128 = vsel %vm84, %v52, 0
  %v131 = vsel %vm84, %v53, 0
  %v134 = vsel %vm84, %v54, 0
  %v137 = vsel %vm84, %v55, 0
  %v140 = vsel %vm84, %v56, 0
  %v143 = vsel %vm84, %v57, 0
  %v146 = vsel %vm84, %v58, 0
  %v149 = vsel %vm84, %v59, 0
  %v152 = vsel %vm84, %v60, 0
  %v155 = vsel %vm84, %v61, 0
  %v158 = vsel %vm84, %v62, 0
  %v161 = vsel %vm84, %v63, 0
  %v164 = vsel %vm84, %v64, 0
  %v167 = vsel %vm84, %v65, 0
  %v170 = vsel %vm84, %v66, 0
  %v173 = vsel %vm84, %v67, 0
  %v176 = vsel %vm84, %v68, 0
  %v179 = vsel %vm84, %v69, 0
  %181 = vmatpush.msra.mxu0 0.0
  %182 = vmatpush.msra.mxu0 0.0
  %183 = vmatpush.msra.mxu0 0.0
  %184 = vmatpush.msra.mxu0 0.0
  %185 = vmatpush.msra.mxu0 0.0
  %186 = vmatpush.msra.mxu0 0.0
  %187 = vmatpush.msra.mxu0 0.0
  %188 = vmatpush.msra.mxu0 0.0
  %189 = vmatpush.msra.mxu0 0.0
  %190 = vmatpush.msra.mxu0 0.0
  %191 = vmatpush.msra.mxu0 0.0
  %192 = vmatpush.msra.mxu0 0.0
  %193 = vmatpush.msra.mxu0 %v76
  %194 = vmatpush.msra.mxu0 %v74
  %195 = vmatpush.msra.mxu0 %v72
  %196 = vmatpush.msra.mxu0 %v70
  %197 = vmatmul.f32.gmra.mxu0 %v86
  %v198 = vpop.f32.mrf.mxu0
  %v199 = vadd.f32 %v80, %v198
  %200 = vmatmul.f32.gmra.mxu0 %v89
  %v201 = vpop.f32.mrf.mxu0
  %v202 = vadd.f32 %v80, %v201
  %203 = vmatmul.f32.gmra.mxu0 %v92
  %v204 = vpop.f32.mrf.mxu0
  %v205 = vadd.f32 %v80, %v204
  %206 = vmatmul.f32.gmra.mxu0 %v95
  %v207 = vpop.f32.mrf.mxu0
  %v208 = vadd.f32 %v80, %v207
  %209 = vmatmul.f32.gmra.mxu0 %v98
  %v210 = vpop.f32.mrf.mxu0
  %v211 = vadd.f32 %v80, %v210
  %212 = vmatmul.f32.gmra.mxu0 %v101
  %v213 = vpop.f32.mrf.mxu0
  %v214 = vadd.f32 %v80, %v213
  %215 = vmatmul.f32.gmra.mxu0 %v104
  %v216 = vpop.f32.mrf.mxu0
  %v217 = vadd.f32 %v80, %v216
  %218 = vmatmul.f32.gmra.mxu0 %v107
  %v219 = vpop.f32.mrf.mxu0
  %v220 = vadd.f32 %v80, %v219
  %221 = vmatmul.f32.gmra.mxu0 %v110
  %v222 = vpop.f32.mrf.mxu0
  %v223 = vadd.f32 %v80, %v222
  %224 = vmatmul.f32.gmra.mxu0 %v113
  %v225 = vpop.f32.mrf.mxu0
  %v226 = vadd.f32 %v80, %v225
  %227 = vmatmul.f32.gmra.mxu0 %v116
  %v228 = vpop.f32.mrf.mxu0
  %v229 = vadd.f32 %v80, %v228
  %230 = vmatmul.f32.gmra.mxu0 %v119
  %v231 = vpop.f32.mrf.mxu0
  %v232 = vadd.f32 %v80, %v231
  %233 = vmatmul.f32.gmra.mxu0 %v122
  %v234 = vpop.f32.mrf.mxu0
  %v235 = vadd.f32 %v80, %v234
  %236 = vmatmul.f32.gmra.mxu0 %v125
  %v237 = vpop.f32.mrf.mxu0
  %v238 = vadd.f32 %v80, %v237
  %239 = vmatmul.f32.gmra.mxu0 %v128
  %v240 = vpop.f32.mrf.mxu0
  %v241 = vadd.f32 %v80, %v240
  %242 = vmatmul.f32.gmra.mxu0 %v131
  %v243 = vpop.f32.mrf.mxu0
  %v244 = vadd.f32 %v80, %v243
  %245 = vmatmul.f32.gmra.mxu0 %v134
  %v246 = vpop.f32.mrf.mxu0
  %v247 = vadd.f32 %v80, %v246
  %248 = vmatmul.f32.gmra.mxu0 %v137
  %v249 = vpop.f32.mrf.mxu0
  %v250 = vadd.f32 %v80, %v249
  %251 = vmatmul.f32.gmra.mxu0 %v140
  %v252 = vpop.f32.mrf.mxu0
  %v253 = vadd.f32 %v80, %v252
  %254 = vmatmul.f32.gmra.mxu0 %v143
  %v255 = vpop.f32.mrf.mxu0
  %v256 = vadd.f32 %v80, %v255
  %257 = vmatmul.f32.gmra.mxu0 %v146
  %v258 = vpop.f32.mrf.mxu0
  %v259 = vadd.f32 %v80, %v258
  %260 = vmatmul.f32.gmra.mxu0 %v149
  %v261 = vpop.f32.mrf.mxu0
  %v262 = vadd.f32 %v80, %v261
  %263 = vmatmul.f32.gmra.mxu0 %v152
  %v264 = vpop.f32.mrf.mxu0
  %v265 = vadd.f32 %v80, %v264
  %266 = vmatmul.f32.gmra.mxu0 %v155
  %v267 = vpop.f32.mrf.mxu0
  %v268 = vadd.f32 %v80, %v267
  %269 = vmatmul.f32.gmra.mxu0 %v158
  %v270 = vpop.f32.mrf.mxu0
  %v271 = vadd.f32 %v80, %v270
  %272 = vmatmul.f32.gmra.mxu0 %v161
  %v273 = vpop.f32.mrf.mxu0
  %v274 = vadd.f32 %v80, %v273
  %275 = vmatmul.f32.gmra.mxu0 %v164
  %v276 = vpop.f32.mrf.mxu0
  %v277 = vadd.f32 %v80, %v276
  %278 = vmatmul.f32.gmra.mxu0 %v167
  %v279 = vpop.f32.mrf.mxu0
  %v280 = vadd.f32 %v80, %v279
  %281 = vmatmul.f32.gmra.mxu0 %v170
  %v282 = vpop.f32.mrf.mxu0
  %v283 = vadd.f32 %v80, %v282
  %284 = vmatmul.f32.gmra.mxu0 %v173
  %v285 = vpop.f32.mrf.mxu0
  %v286 = vadd.f32 %v80, %v285
  %287 = vmatmul.f32.gmra.mxu0 %v176
  %v288 = vpop.f32.mrf.mxu0
  %v289 = vadd.f32 %v80, %v288
  %290 = vmatmul.f32.gmra.mxu0 %v179
  %v291 = vpop.f32.mrf.mxu0
  %v292 = vadd.f32 %v80, %v291
  %293 = vdwg.mxu0
  %294 = vmatpush.msra.mxu0 0.0
  %295 = vmatpush.msra.mxu0 0.0
  %296 = vmatpush.msra.mxu0 0.0
  %297 = vmatpush.msra.mxu0 0.0
  %298 = vmatpush.msra.mxu0 0.0
  %299 = vmatpush.msra.mxu0 0.0
  %300 = vmatpush.msra.mxu0 0.0
  %301 = vmatpush.msra.mxu0 0.0
  %302 = vmatpush.msra.mxu0 0.0
  %303 = vmatpush.msra.mxu0 0.0
  %304 = vmatpush.msra.mxu0 0.0
  %305 = vmatpush.msra.mxu0 0.0
  %306 = vmatpush.msra.mxu0 %v77
  %307 = vmatpush.msra.mxu0 %v75
  %308 = vmatpush.msra.mxu0 %v73
  %309 = vmatpush.msra.mxu0 %v71
  %310 = vmatmul.f32.gmra.mxu0 %v86
  %v311 = vpop.f32.mrf.mxu0
  %v312 = vadd.f32 %v81, %v311
  %313 = vmatmul.f32.gmra.mxu0 %v89
  %v314 = vpop.f32.mrf.mxu0
  %v315 = vadd.f32 %v81, %v314
  %316 = vmatmul.f32.gmra.mxu0 %v92
  %v317 = vpop.f32.mrf.mxu0
  %v318 = vadd.f32 %v81, %v317
  %319 = vmatmul.f32.gmra.mxu0 %v95
  %v320 = vpop.f32.mrf.mxu0
  %v321 = vadd.f32 %v81, %v320
  %322 = vmatmul.f32.gmra.mxu0 %v98
  %v323 = vpop.f32.mrf.mxu0
  %v324 = vadd.f32 %v81, %v323
  %325 = vmatmul.f32.gmra.mxu0 %v101
  %v326 = vpop.f32.mrf.mxu0
  %v327 = vadd.f32 %v81, %v326
  %328 = vmatmul.f32.gmra.mxu0 %v104
  %v329 = vpop.f32.mrf.mxu0
  %v330 = vadd.f32 %v81, %v329
  %331 = vmatmul.f32.gmra.mxu0 %v107
  %v332 = vpop.f32.mrf.mxu0
  %v333 = vadd.f32 %v81, %v332
  %334 = vmatmul.f32.gmra.mxu0 %v110
  %v335 = vpop.f32.mrf.mxu0
  %v336 = vadd.f32 %v81, %v335
  %337 = vmatmul.f32.gmra.mxu0 %v113
  %v338 = vpop.f32.mrf.mxu0
  %v339 = vadd.f32 %v81, %v338
  %340 = vmatmul.f32.gmra.mxu0 %v116
  %v341 = vpop.f32.mrf.mxu0
  %v342 = vadd.f32 %v81, %v341
  %343 = vmatmul.f32.gmra.mxu0 %v119
  %v344 = vpop.f32.mrf.mxu0
  %v345 = vadd.f32 %v81, %v344
  %346 = vmatmul.f32.gmra.mxu0 %v122
  %v347 = vpop.f32.mrf.mxu0
  %v348 = vadd.f32 %v81, %v347
  %349 = vmatmul.f32.gmra.mxu0 %v125
  %v350 = vpop.f32.mrf.mxu0
  %v351 = vadd.f32 %v81, %v350
  %352 = vmatmul.f32.gmra.mxu0 %v128
  %v353 = vpop.f32.mrf.mxu0
  %v354 = vadd.f32 %v81, %v353
  %355 = vmatmul.f32.gmra.mxu0 %v131
  %v356 = vpop.f32.mrf.mxu0
  %v357 = vadd.f32 %v81, %v356
  %358 = vmatmul.f32.gmra.mxu0 %v134
  %v359 = vpop.f32.mrf.mxu0
  %v360 = vadd.f32 %v81, %v359
  %361 = vmatmul.f32.gmra.mxu0 %v137
  %v362 = vpop.f32.mrf.mxu0
  %v363 = vadd.f32 %v81, %v362
  %364 = vmatmul.f32.gmra.mxu0 %v140
  %v365 = vpop.f32.mrf.mxu0
  %v366 = vadd.f32 %v81, %v365
  %367 = vmatmul.f32.gmra.mxu0 %v143
  %v368 = vpop.f32.mrf.mxu0
  %v369 = vadd.f32 %v81, %v368
  %370 = vmatmul.f32.gmra.mxu0 %v146
  %v371 = vpop.f32.mrf.mxu0
  %v372 = vadd.f32 %v81, %v371
  %373 = vmatmul.f32.gmra.mxu0 %v149
  %v374 = vpop.f32.mrf.mxu0
  %v375 = vadd.f32 %v81, %v374
  %376 = vmatmul.f32.gmra.mxu0 %v152
  %v377 = vpop.f32.mrf.mxu0
  %v378 = vadd.f32 %v81, %v377
  %379 = vmatmul.f32.gmra.mxu0 %v155
  %v380 = vpop.f32.mrf.mxu0
  %v381 = vadd.f32 %v81, %v380
  %382 = vmatmul.f32.gmra.mxu0 %v158
  %v383 = vpop.f32.mrf.mxu0
  %v384 = vadd.f32 %v81, %v383
  %385 = vmatmul.f32.gmra.mxu0 %v161
  %v386 = vpop.f32.mrf.mxu0
  %v387 = vadd.f32 %v81, %v386
  %388 = vmatmul.f32.gmra.mxu0 %v164
  %v389 = vpop.f32.mrf.mxu0
  %v390 = vadd.f32 %v81, %v389
  %391 = vmatmul.f32.gmra.mxu0 %v167
  %v392 = vpop.f32.mrf.mxu0
  %v393 = vadd.f32 %v81, %v392
  %394 = vmatmul.f32.gmra.mxu0 %v170
  %v395 = vpop.f32.mrf.mxu0
  %v396 = vadd.f32 %v81, %v395
  %397 = vmatmul.f32.gmra.mxu0 %v173
  %v398 = vpop.f32.mrf.mxu0
  %v399 = vadd.f32 %v81, %v398
  %400 = vmatmul.f32.gmra.mxu0 %v176
  %v401 = vpop.f32.mrf.mxu0
  %v402 = vadd.f32 %v81, %v401
  %403 = vmatmul.f32.gmra.mxu0 %v179
  %v404 = vpop.f32.mrf.mxu0
  %v405 = vadd.f32 %v81, %v404
  %406 = vdwg.mxu0
  %v407 = vmul.f32 %v199, 0.01
  %v408 = vmul.f32 %v312, 0.01
  %v409 = vmul.f32 %v202, 0.01
  %v410 = vmul.f32 %v315, 0.01
  %v411 = vmul.f32 %v205, 0.01
  %v412 = vmul.f32 %v318, 0.01
  %v413 = vmul.f32 %v208, 0.01
  %v414 = vmul.f32 %v321, 0.01
  %v415 = vmul.f32 %v211, 0.01
  %v416 = vmul.f32 %v324, 0.01
  %v417 = vmul.f32 %v214, 0.01
  %v418 = vmul.f32 %v327, 0.01
  %v419 = vmul.f32 %v217, 0.01
  %v420 = vmul.f32 %v330, 0.01
  %v421 = vmul.f32 %v220, 0.01
  %v422 = vmul.f32 %v333, 0.01
  %v423 = vmul.f32 %v223, 0.01
  %v424 = vmul.f32 %v336, 0.01
  %v425 = vmul.f32 %v226, 0.01
  %v426 = vmul.f32 %v339, 0.01
  %v427 = vmul.f32 %v229, 0.01
  %v428 = vmul.f32 %v342, 0.01
  %v429 = vmul.f32 %v232, 0.01
  %v430 = vmul.f32 %v345, 0.01
  %v431 = vmul.f32 %v235, 0.01
  %v432 = vmul.f32 %v348, 0.01
  %v433 = vmul.f32 %v238, 0.01
  %v434 = vmul.f32 %v351, 0.01
  %v435 = vmul.f32 %v241, 0.01
  %v436 = vmul.f32 %v354, 0.01
  %v437 = vmul.f32 %v244, 0.01
  %v438 = vmul.f32 %v357, 0.01
  %v439 = vmul.f32 %v247, 0.01
  %v440 = vmul.f32 %v360, 0.01
  %v441 = vmul.f32 %v250, 0.01
  %v442 = vmul.f32 %v363, 0.01
  %v443 = vmul.f32 %v253, 0.01
  %v444 = vmul.f32 %v366, 0.01
  %v445 = vmul.f32 %v256, 0.01
  %v446 = vmul.f32 %v369, 0.01
  %v447 = vmul.f32 %v259, 0.01
  %v448 = vmul.f32 %v372, 0.01
  %v449 = vmul.f32 %v262, 0.01
  %v450 = vmul.f32 %v375, 0.01
  %v451 = vmul.f32 %v265, 0.01
  %v452 = vmul.f32 %v378, 0.01
  %v453 = vmul.f32 %v268, 0.01
  %v454 = vmul.f32 %v381, 0.01
  %v455 = vmul.f32 %v271, 0.01
  %v456 = vmul.f32 %v384, 0.01
  %v457 = vmul.f32 %v274, 0.01
  %v458 = vmul.f32 %v387, 0.01
  %v459 = vmul.f32 %v277, 0.01
  %v460 = vmul.f32 %v390, 0.01
  %v461 = vmul.f32 %v280, 0.01
  %v462 = vmul.f32 %v393, 0.01
  %v463 = vmul.f32 %v283, 0.01
  %v464 = vmul.f32 %v396, 0.01
  %v465 = vmul.f32 %v286, 0.01
  %v466 = vmul.f32 %v399, 0.01
  %v467 = vmul.f32 %v289, 0.01
  %v468 = vmul.f32 %v402, 0.01
  %v469 = vmul.f32 %v292, 0.01
  %v470 = vmul.f32 %v405, 0.01
  %v471 = vmax.f32 %v199, %v407
  %v472 = vmax.f32 %v312, %v408
  %v473 = vmax.f32 %v202, %v409
  %v474 = vmax.f32 %v315, %v410
  %v475 = vmax.f32 %v205, %v411
  %v476 = vmax.f32 %v318, %v412
  %v477 = vmax.f32 %v208, %v413
  %v478 = vmax.f32 %v321, %v414
  %v479 = vmax.f32 %v211, %v415
  %v480 = vmax.f32 %v324, %v416
  %v481 = vmax.f32 %v214, %v417
  %v482 = vmax.f32 %v327, %v418
  %v483 = vmax.f32 %v217, %v419
  %v484 = vmax.f32 %v330, %v420
  %v485 = vmax.f32 %v220, %v421
  %v486 = vmax.f32 %v333, %v422
  %v487 = vmax.f32 %v223, %v423
  %v488 = vmax.f32 %v336, %v424
  %v489 = vmax.f32 %v226, %v425
  %v490 = vmax.f32 %v339, %v426
  %v491 = vmax.f32 %v229, %v427
  %v492 = vmax.f32 %v342, %v428
  %v493 = vmax.f32 %v232, %v429
  %v494 = vmax.f32 %v345, %v430
  %v495 = vmax.f32 %v235, %v431
  %v496 = vmax.f32 %v348, %v432
  %v497 = vmax.f32 %v238, %v433
  %v498 = vmax.f32 %v351, %v434
  %v499 = vmax.f32 %v241, %v435
  %v500 = vmax.f32 %v354, %v436
  %v501 = vmax.f32 %v244, %v437
  %v502 = vmax.f32 %v357, %v438
  %v503 = vmax.f32 %v247, %v439
  %v504 = vmax.f32 %v360, %v440
  %v505 = vmax.f32 %v250, %v441
  %v506 = vmax.f32 %v363, %v442
  %v507 = vmax.f32 %v253, %v443
  %v508 = vmax.f32 %v366, %v444
  %v509 = vmax.f32 %v256, %v445
  %v510 = vmax.f32 %v369, %v446
  %v511 = vmax.f32 %v259, %v447
  %v512 = vmax.f32 %v372, %v448
  %v513 = vmax.f32 %v262, %v449
  %v514 = vmax.f32 %v375, %v450
  %v515 = vmax.f32 %v265, %v451
  %v516 = vmax.f32 %v378, %v452
  %v517 = vmax.f32 %v268, %v453
  %v518 = vmax.f32 %v381, %v454
  %v519 = vmax.f32 %v271, %v455
  %v520 = vmax.f32 %v384, %v456
  %v521 = vmax.f32 %v274, %v457
  %v522 = vmax.f32 %v387, %v458
  %v523 = vmax.f32 %v277, %v459
  %v524 = vmax.f32 %v390, %v460
  %v525 = vmax.f32 %v280, %v461
  %v526 = vmax.f32 %v393, %v462
  %v527 = vmax.f32 %v283, %v463
  %v528 = vmax.f32 %v396, %v464
  %v529 = vmax.f32 %v286, %v465
  %v530 = vmax.f32 %v399, %v466
  %v531 = vmax.f32 %v289, %v467
  %v532 = vmax.f32 %v402, %v468
  %v533 = vmax.f32 %v292, %v469
  %v534 = vmax.f32 %v405, %v470
  %v535 = vsub.f32 %v503, %v471
  %v536 = vsub.f32 %v504, %v472
  %v537 = vsub.f32 %v505, %v473
  %v538 = vsub.f32 %v506, %v474
  %v539 = vsub.f32 %v507, %v475
  %v540 = vsub.f32 %v508, %v476
  %v541 = vsub.f32 %v509, %v477
  %v542 = vsub.f32 %v510, %v478
  %v543 = vsub.f32 %v511, %v479
  %v544 = vsub.f32 %v512, %v480
  %v545 = vsub.f32 %v513, %v481
  %v546 = vsub.f32 %v514, %v482
  %v547 = vsub.f32 %v515, %v483
  %v548 = vsub.f32 %v516, %v484
  %v549 = vsub.f32 %v517, %v485
  %v550 = vsub.f32 %v518, %v486
  %v551 = vsub.f32 %v519, %v487
  %v552 = vsub.f32 %v520, %v488
  %v553 = vsub.f32 %v521, %v489
  %v554 = vsub.f32 %v522, %v490
  %v555 = vsub.f32 %v523, %v491
  %v556 = vsub.f32 %v524, %v492
  %v557 = vsub.f32 %v525, %v493
  %v558 = vsub.f32 %v526, %v494
  %v559 = vsub.f32 %v527, %v495
  %v560 = vsub.f32 %v528, %v496
  %v561 = vsub.f32 %v529, %v497
  %v562 = vsub.f32 %v530, %v498
  %v563 = vsub.f32 %v531, %v499
  %v564 = vsub.f32 %v532, %v500
  %v565 = vsub.f32 %v533, %v501
  %v566 = vsub.f32 %v534, %v502
  %v567 = vld [vmem:[%s3] sm:$0x3]
  %v569 = vperm.slane %v567, 0
  %v570 = vperm.slane %v567, 1
  %v573 = vmul.f32 %v535, %v569
  %v574 = vmul.f32 %v536, %v570
  %v575 = vmul.f32 %v537, %v569
  %v576 = vmul.f32 %v538, %v570
  %v577 = vmul.f32 %v539, %v569
  %v578 = vmul.f32 %v540, %v570
  %v579 = vmul.f32 %v541, %v569
  %v580 = vmul.f32 %v542, %v570
  %v581 = vmul.f32 %v543, %v569
  %v582 = vmul.f32 %v544, %v570
  %v583 = vmul.f32 %v545, %v569
  %v584 = vmul.f32 %v546, %v570
  %v585 = vmul.f32 %v547, %v569
  %v586 = vmul.f32 %v548, %v570
  %v587 = vmul.f32 %v549, %v569
  %v588 = vmul.f32 %v550, %v570
  %v589 = vmul.f32 %v551, %v569
  %v590 = vmul.f32 %v552, %v570
  %v591 = vmul.f32 %v553, %v569
  %v592 = vmul.f32 %v554, %v570
  %v593 = vmul.f32 %v555, %v569
  %v594 = vmul.f32 %v556, %v570
  %v595 = vmul.f32 %v557, %v569
  %v596 = vmul.f32 %v558, %v570
  %v597 = vmul.f32 %v559, %v569
  %v598 = vmul.f32 %v560, %v570
  %v599 = vmul.f32 %v561, %v569
  %v600 = vmul.f32 %v562, %v570
  %v601 = vmul.f32 %v563, %v569
  %v602 = vmul.f32 %v564, %v570
  %v603 = vmul.f32 %v565, %v569
  %v604 = vmul.f32 %v566, %v570
  %v605 = vand.u32 2147483647, %v573
  %v606 = vand.u32 2147483647, %v574
  %v607 = vand.u32 2147483647, %v575
  %v608 = vand.u32 2147483647, %v576
  %v609 = vand.u32 2147483647, %v577
  %v610 = vand.u32 2147483647, %v578
  %v611 = vand.u32 2147483647, %v579
  %v612 = vand.u32 2147483647, %v580
  %v613 = vand.u32 2147483647, %v581
  %v614 = vand.u32 2147483647, %v582
  %v615 = vand.u32 2147483647, %v583
  %v616 = vand.u32 2147483647, %v584
  %v617 = vand.u32 2147483647, %v585
  %v618 = vand.u32 2147483647, %v586
  %v619 = vand.u32 2147483647, %v587
  %v620 = vand.u32 2147483647, %v588
  %v621 = vand.u32 2147483647, %v589
  %v622 = vand.u32 2147483647, %v590
  %v623 = vand.u32 2147483647, %v591
  %v624 = vand.u32 2147483647, %v592
  %v625 = vand.u32 2147483647, %v593
  %v626 = vand.u32 2147483647, %v594
  %v627 = vand.u32 2147483647, %v595
  %v628 = vand.u32 2147483647, %v596
  %v629 = vand.u32 2147483647, %v597
  %v630 = vand.u32 2147483647, %v598
  %v631 = vand.u32 2147483647, %v599
  %v632 = vand.u32 2147483647, %v600
  %v633 = vand.u32 2147483647, %v601
  %v634 = vand.u32 2147483647, %v602
  %v635 = vand.u32 2147483647, %v603
  %v636 = vand.u32 2147483647, %v604
  %v637 = vadd.f32 %v605, %v606
  %638 = vadd.xlane.f32.xlu0 %v637
  %v639 = vpop.xlane.xlu0 %638
  %v640 = vadd.f32 %v607, %v608
  %641 = vadd.xlane.f32.xlu0 %v640
  %v642 = vpop.xlane.xlu0 %641
  %v643 = vadd.f32 %v609, %v610
  %644 = vadd.xlane.f32.xlu0 %v643
  %v645 = vpop.xlane.xlu0 %644
  %v646 = vadd.f32 %v611, %v612
  %647 = vadd.xlane.f32.xlu0 %v646
  %v648 = vpop.xlane.xlu0 %647
  %v649 = vadd.f32 %v613, %v614
  %650 = vadd.xlane.f32.xlu0 %v649
  %v651 = vpop.xlane.xlu0 %650
  %v652 = vadd.f32 %v615, %v616
  %653 = vadd.xlane.f32.xlu0 %v652
  %v654 = vpop.xlane.xlu0 %653
  %v655 = vadd.f32 %v617, %v618
  %656 = vadd.xlane.f32.xlu0 %v655
  %v657 = vpop.xlane.xlu0 %656
  %v658 = vadd.f32 %v619, %v620
  %659 = vadd.xlane.f32.xlu0 %v658
  %v660 = vpop.xlane.xlu0 %659
  %v661 = vadd.f32 %v621, %v622
  %662 = vadd.xlane.f32.xlu0 %v661
  %v663 = vpop.xlane.xlu0 %662
  %v664 = vadd.f32 %v623, %v624
  %665 = vadd.xlane.f32.xlu0 %v664
  %v666 = vpop.xlane.xlu0 %665
  %v667 = vadd.f32 %v625, %v626
  %668 = vadd.xlane.f32.xlu0 %v667
  %v669 = vpop.xlane.xlu0 %668
  %v670 = vadd.f32 %v627, %v628
  %671 = vadd.xlane.f32.xlu0 %v670
  %v672 = vpop.xlane.xlu0 %671
  %v673 = vadd.f32 %v629, %v630
  %674 = vadd.xlane.f32.xlu0 %v673
  %v675 = vpop.xlane.xlu0 %674
  %v676 = vadd.f32 %v631, %v632
  %677 = vadd.xlane.f32.xlu0 %v676
  %v678 = vpop.xlane.xlu0 %677
  %v679 = vadd.f32 %v633, %v634
  %680 = vadd.xlane.f32.xlu0 %v679
  %v681 = vpop.xlane.xlu0 %680
  %v682 = vadd.f32 %v635, %v636
  %683 = vadd.xlane.f32.xlu0 %v682
  %v684 = vpop.xlane.xlu0 %683
  %v685 = vadd.f32 %v639, 0.0
  %v686 = vadd.f32 %v642, 0.0
  %v687 = vadd.f32 %v645, 0.0
  %v688 = vadd.f32 %v648, 0.0
  %v689 = vadd.f32 %v651, 0.0
  %v690 = vadd.f32 %v654, 0.0
  %v691 = vadd.f32 %v657, 0.0
  %v692 = vadd.f32 %v660, 0.0
  %v693 = vadd.f32 %v663, 0.0
  %v694 = vadd.f32 %v666, 0.0
  %v695 = vadd.f32 %v669, 0.0
  %v696 = vadd.f32 %v672, 0.0
  %v697 = vadd.f32 %v675, 0.0
  %v698 = vadd.f32 %v678, 0.0
  %v699 = vadd.f32 %v681, 0.0
  %v700 = vadd.f32 %v684, 0.0
  %v701 = vld [vmem:[%s4] sm:$0xff]
  %v702 = vld [vmem:[%s4 + $0x8] sm:$0xff]
  %v703 = vld [vmem:[%s4 + $0x10] sm:$0xff]
  %v704 = vld [vmem:[%s4 + $0x18] sm:$0xff]
  %v705 = vld [vmem:[%s4 + $0x20] sm:$0xff]
  %v706 = vld [vmem:[%s4 + $0x28] sm:$0xff]
  %v707 = vld [vmem:[%s4 + $0x30] sm:$0xff]
  %v708 = vld [vmem:[%s4 + $0x38] sm:$0xff]
  %v709 = vld [vmem:[%s4 + $0x40] sm:$0xff]
  %v710 = vld [vmem:[%s4 + $0x48] sm:$0xff]
  %v711 = vld [vmem:[%s4 + $0x50] sm:$0xff]
  %v712 = vld [vmem:[%s4 + $0x58] sm:$0xff]
  %v713 = vld [vmem:[%s4 + $0x60] sm:$0xff]
  %v714 = vld [vmem:[%s4 + $0x68] sm:$0xff]
  %v715 = vld [vmem:[%s4 + $0x70] sm:$0xff]
  %v716 = vld [vmem:[%s4 + $0x78] sm:$0xff]
  %v717 = vld [vmem:[%s4 + $0x80] sm:$0xff]
  %v718 = vld [vmem:[%s4 + $0x88] sm:$0xff]
  %v719 = vld [vmem:[%s4 + $0x90] sm:$0xff]
  %v720 = vld [vmem:[%s4 + $0x98] sm:$0xff]
  %v721 = vld [vmem:[%s4 + $0xa0] sm:$0xff]
  %v722 = vld [vmem:[%s4 + $0xa8] sm:$0xff]
  %v723 = vld [vmem:[%s4 + $0xb0] sm:$0xff]
  %v724 = vld [vmem:[%s4 + $0xb8] sm:$0xff]
  %v725 = vld [vmem:[%s4 + $0xc0] sm:$0xff]
  %v726 = vld [vmem:[%s4 + $0xc8] sm:$0xff]
  %v727 = vld [vmem:[%s4 + $0xd0] sm:$0xff]
  %v728 = vld [vmem:[%s4 + $0xd8] sm:$0xff]
  %v729 = vld [vmem:[%s4 + $0xe0] sm:$0xff]
  %v730 = vld [vmem:[%s4 + $0xe8] sm:$0xff]
  %v731 = vld [vmem:[%s4 + $0xf0] sm:$0xff]
  %v732 = vld [vmem:[%s4 + $0xf8] sm:$0xff]
  %v733 = vld [vmem:[%s5] sm:$0x1]
  %v735 = vperm.slane %v733, 0
  %737 = vmatpush.msra.mxu0 %v716
  %738 = vmatpush.msra.mxu0 %v715
  %739 = vmatpush.msra.mxu0 %v714
  %740 = vmatpush.msra.mxu0 %v713
  %741 = vmatpush.msra.mxu0 %v712
  %742 = vmatpush.msra.mxu0 %v711
  %743 = vmatpush.msra.mxu0 %v710
  %744 = vmatpush.msra.mxu0 %v709
  %745 = vmatpush.msra.mxu0 %v708
  %746 = vmatpush.msra.mxu0 %v707
  %747 = vmatpush.msra.mxu0 %v706
  %748 = vmatpush.msra.mxu0 %v705
  %749 = vmatpush.msra.mxu0 %v704
  %750 = vmatpush.msra.mxu0 %v703
  %751 = vmatpush.msra.mxu0 %v702
  %752 = vmatpush.msra.mxu0 %v701
  %753 = vmatmul.f32.gmra.mxu0 %v471
  %v754 = vpop.f32.mrf.mxu0
  %v755 = vadd.f32 %v735, %v754
  %756 = vmatmul.f32.gmra.mxu0 %v473
  %v757 = vpop.f32.mrf.mxu0
  %v758 = vadd.f32 %v735, %v757
  %759 = vmatmul.f32.gmra.mxu0 %v475
  %v760 = vpop.f32.mrf.mxu0
  %v761 = vadd.f32 %v735, %v760
  %762 = vmatmul.f32.gmra.mxu0 %v477
  %v763 = vpop.f32.mrf.mxu0
  %v764 = vadd.f32 %v735, %v763
  %765 = vmatmul.f32.gmra.mxu0 %v479
  %v766 = vpop.f32.mrf.mxu0
  %v767 = vadd.f32 %v735, %v766
  %768 = vmatmul.f32.gmra.mxu0 %v481
  %v769 = vpop.f32.mrf.mxu0
  %v770 = vadd.f32 %v735, %v769
  %771 = vmatmul.f32.gmra.mxu0 %v483
  %v772 = vpop.f32.mrf.mxu0
  %v773 = vadd.f32 %v735, %v772
  %774 = vmatmul.f32.gmra.mxu0 %v485
  %v775 = vpop.f32.mrf.mxu0
  %v776 = vadd.f32 %v735, %v775
  %777 = vmatmul.f32.gmra.mxu0 %v487
  %v778 = vpop.f32.mrf.mxu0
  %v779 = vadd.f32 %v735, %v778
  %780 = vmatmul.f32.gmra.mxu0 %v489
  %v781 = vpop.f32.mrf.mxu0
  %v782 = vadd.f32 %v735, %v781
  %783 = vmatmul.f32.gmra.mxu0 %v491
  %v784 = vpop.f32.mrf.mxu0
  %v785 = vadd.f32 %v735, %v784
  %786 = vmatmul.f32.gmra.mxu0 %v493
  %v787 = vpop.f32.mrf.mxu0
  %v788 = vadd.f32 %v735, %v787
  %789 = vmatmul.f32.gmra.mxu0 %v495
  %v790 = vpop.f32.mrf.mxu0
  %v791 = vadd.f32 %v735, %v790
  %792 = vmatmul.f32.gmra.mxu0 %v497
  %v793 = vpop.f32.mrf.mxu0
  %v794 = vadd.f32 %v735, %v793
  %795 = vmatmul.f32.gmra.mxu0 %v499
  %v796 = vpop.f32.mrf.mxu0
  %v797 = vadd.f32 %v735, %v796
  %798 = vmatmul.f32.gmra.mxu0 %v501
  %v799 = vpop.f32.mrf.mxu0
  %v800 = vadd.f32 %v735, %v799
  %801 = vmatmul.f32.gmra.mxu0 %v503
  %v802 = vpop.f32.mrf.mxu0
  %v803 = vadd.f32 %v735, %v802
  %804 = vmatmul.f32.gmra.mxu0 %v505
  %v805 = vpop.f32.mrf.mxu0
  %v806 = vadd.f32 %v735, %v805
  %807 = vmatmul.f32.gmra.mxu0 %v507
  %v808 = vpop.f32.mrf.mxu0
  %v809 = vadd.f32 %v735, %v808
  %810 = vmatmul.f32.gmra.mxu0 %v509
  %v811 = vpop.f32.mrf.mxu0
  %v812 = vadd.f32 %v735, %v811
  %813 = vmatmul.f32.gmra.mxu0 %v511
  %v814 = vpop.f32.mrf.mxu0
  %v815 = vadd.f32 %v735, %v814
  %816 = vmatmul.f32.gmra.mxu0 %v513
  %v817 = vpop.f32.mrf.mxu0
  %v818 = vadd.f32 %v735, %v817
  %819 = vmatmul.f32.gmra.mxu0 %v515
  %v820 = vpop.f32.mrf.mxu0
  %v821 = vadd.f32 %v735, %v820
  %822 = vmatmul.f32.gmra.mxu0 %v517
  %v823 = vpop.f32.mrf.mxu0
  %v824 = vadd.f32 %v735, %v823
  %825 = vmatmul.f32.gmra.mxu0 %v519
  %v826 = vpop.f32.mrf.mxu0
  %v827 = vadd.f32 %v735, %v826
  %828 = vmatmul.f32.gmra.mxu0 %v521
  %v829 = vpop.f32.mrf.mxu0
  %v830 = vadd.f32 %v735, %v829
  %831 = vmatmul.f32.gmra.mxu0 %v523
  %v832 = vpop.f32.mrf.mxu0
  %v833 = vadd.f32 %v735, %v832
  %834 = vmatmul.f32.gmra.mxu0 %v525
  %v835 = vpop.f32.mrf.mxu0
  %v836 = vadd.f32 %v735, %v835
  %837 = vmatmul.f32.gmra.mxu0 %v527
  %v838 = vpop.f32.mrf.mxu0
  %v839 = vadd.f32 %v735, %v838
  %840 = vmatmul.f32.gmra.mxu0 %v529
  %v841 = vpop.f32.mrf.mxu0
  %v842 = vadd.f32 %v735, %v841
  %843 = vmatmul.f32.gmra.mxu0 %v531
  %v844 = vpop.f32.mrf.mxu0
  %v845 = vadd.f32 %v735, %v844
  %846 = vmatmul.f32.gmra.mxu0 %v533
  %v847 = vpop.f32.mrf.mxu0
  %v848 = vadd.f32 %v735, %v847
  %849 = vdwg.mxu0
  %850 = vmatpush.msra.mxu0 %v732
  %851 = vmatpush.msra.mxu0 %v731
  %852 = vmatpush.msra.mxu0 %v730
  %853 = vmatpush.msra.mxu0 %v729
  %854 = vmatpush.msra.mxu0 %v728
  %855 = vmatpush.msra.mxu0 %v727
  %856 = vmatpush.msra.mxu0 %v726
  %857 = vmatpush.msra.mxu0 %v725
  %858 = vmatpush.msra.mxu0 %v724
  %859 = vmatpush.msra.mxu0 %v723
  %860 = vmatpush.msra.mxu0 %v722
  %861 = vmatpush.msra.mxu0 %v721
  %862 = vmatpush.msra.mxu0 %v720
  %863 = vmatpush.msra.mxu0 %v719
  %864 = vmatpush.msra.mxu0 %v718
  %865 = vmatpush.msra.mxu0 %v717
  %866 = vmatmul.f32.gmra.mxu0 %v472
  %v867 = vpop.f32.mrf.mxu0
  %v868 = vadd.f32 %v755, %v867
  %869 = vmatmul.f32.gmra.mxu0 %v474
  %v870 = vpop.f32.mrf.mxu0
  %v871 = vadd.f32 %v758, %v870
  %872 = vmatmul.f32.gmra.mxu0 %v476
  %v873 = vpop.f32.mrf.mxu0
  %v874 = vadd.f32 %v761, %v873
  %875 = vmatmul.f32.gmra.mxu0 %v478
  %v876 = vpop.f32.mrf.mxu0
  %v877 = vadd.f32 %v764, %v876
  %878 = vmatmul.f32.gmra.mxu0 %v480
  %v879 = vpop.f32.mrf.mxu0
  %v880 = vadd.f32 %v767, %v879
  %881 = vmatmul.f32.gmra.mxu0 %v482
  %v882 = vpop.f32.mrf.mxu0
  %v883 = vadd.f32 %v770, %v882
  %884 = vmatmul.f32.gmra.mxu0 %v484
  %v885 = vpop.f32.mrf.mxu0
  %v886 = vadd.f32 %v773, %v885
  %887 = vmatmul.f32.gmra.mxu0 %v486
  %v888 = vpop.f32.mrf.mxu0
  %v889 = vadd.f32 %v776, %v888
  %890 = vmatmul.f32.gmra.mxu0 %v488
  %v891 = vpop.f32.mrf.mxu0
  %v892 = vadd.f32 %v779, %v891
  %893 = vmatmul.f32.gmra.mxu0 %v490
  %v894 = vpop.f32.mrf.mxu0
  %v895 = vadd.f32 %v782, %v894
  %896 = vmatmul.f32.gmra.mxu0 %v492
  %v897 = vpop.f32.mrf.mxu0
  %v898 = vadd.f32 %v785, %v897
  %899 = vmatmul.f32.gmra.mxu0 %v494
  %v900 = vpop.f32.mrf.mxu0
  %v901 = vadd.f32 %v788, %v900
  %902 = vmatmul.f32.gmra.mxu0 %v496
  %v903 = vpop.f32.mrf.mxu0
  %v904 = vadd.f32 %v791, %v903
  %905 = vmatmul.f32.gmra.mxu0 %v498
  %v906 = vpop.f32.mrf.mxu0
  %v907 = vadd.f32 %v794, %v906
  %908 = vmatmul.f32.gmra.mxu0 %v500
  %v909 = vpop.f32.mrf.mxu0
  %v910 = vadd.f32 %v797, %v909
  %911 = vmatmul.f32.gmra.mxu0 %v502
  %v912 = vpop.f32.mrf.mxu0
  %v913 = vadd.f32 %v800, %v912
  %914 = vmatmul.f32.gmra.mxu0 %v504
  %v915 = vpop.f32.mrf.mxu0
  %v916 = vadd.f32 %v803, %v915
  %917 = vmatmul.f32.gmra.mxu0 %v506
  %v918 = vpop.f32.mrf.mxu0
  %v919 = vadd.f32 %v806, %v918
  %920 = vmatmul.f32.gmra.mxu0 %v508
  %v921 = vpop.f32.mrf.mxu0
  %v922 = vadd.f32 %v809, %v921
  %923 = vmatmul.f32.gmra.mxu0 %v510
  %v924 = vpop.f32.mrf.mxu0
  %v925 = vadd.f32 %v812, %v924
  %926 = vmatmul.f32.gmra.mxu0 %v512
  %v927 = vpop.f32.mrf.mxu0
  %v928 = vadd.f32 %v815, %v927
  %929 = vmatmul.f32.gmra.mxu0 %v514
  %v930 = vpop.f32.mrf.mxu0
  %v931 = vadd.f32 %v818, %v930
  %932 = vmatmul.f32.gmra.mxu0 %v516
  %v933 = vpop.f32.mrf.mxu0
  %v934 = vadd.f32 %v821, %v933
  %935 = vmatmul.f32.gmra.mxu0 %v518
  %v936 = vpop.f32.mrf.mxu0
  %v937 = vadd.f32 %v824, %v936
  %938 = vmatmul.f32.gmra.mxu0 %v520
  %v939 = vpop.f32.mrf.mxu0
  %v940 = vadd.f32 %v827, %v939
  %941 = vmatmul.f32.gmra.mxu0 %v522
  %v942 = vpop.f32.mrf.mxu0
  %v943 = vadd.f32 %v830, %v942
  %944 = vmatmul.f32.gmra.mxu0 %v524
  %v945 = vpop.f32.mrf.mxu0
  %v946 = vadd.f32 %v833, %v945
  %947 = vmatmul.f32.gmra.mxu0 %v526
  %v948 = vpop.f32.mrf.mxu0
  %v949 = vadd.f32 %v836, %v948
  %950 = vmatmul.f32.gmra.mxu0 %v528
  %v951 = vpop.f32.mrf.mxu0
  %v952 = vadd.f32 %v839, %v951
  %953 = vmatmul.f32.gmra.mxu0 %v530
  %v954 = vpop.f32.mrf.mxu0
  %v955 = vadd.f32 %v842, %v954
  %956 = vmatmul.f32.gmra.mxu0 %v532
  %v957 = vpop.f32.mrf.mxu0
  %v958 = vadd.f32 %v845, %v957
  %959 = vmatmul.f32.gmra.mxu0 %v534
  %v960 = vpop.f32.mrf.mxu0
  %v961 = vadd.f32 %v848, %v960
  %962 = vdwg.mxu0
  %v963 = vmul.f32 %v868, 0.01
  %v964 = vmul.f32 %v871, 0.01
  %v965 = vmul.f32 %v874, 0.01
  %v966 = vmul.f32 %v877, 0.01
  %v967 = vmul.f32 %v880, 0.01
  %v968 = vmul.f32 %v883, 0.01
  %v969 = vmul.f32 %v886, 0.01
  %v970 = vmul.f32 %v889, 0.01
  %v971 = vmul.f32 %v892, 0.01
  %v972 = vmul.f32 %v895, 0.01
  %v973 = vmul.f32 %v898, 0.01
  %v974 = vmul.f32 %v901, 0.01
  %v975 = vmul.f32 %v904, 0.01
  %v976 = vmul.f32 %v907, 0.01
  %v977 = vmul.f32 %v910, 0.01
  %v978 = vmul.f32 %v913, 0.01
  %v979 = vmul.f32 %v916, 0.01
  %v980 = vmul.f32 %v919, 0.01
  %v981 = vmul.f32 %v922, 0.01
  %v982 = vmul.f32 %v925, 0.01
  %v983 = vmul.f32 %v928, 0.01
  %v984 = vmul.f32 %v931, 0.01
  %v985 = vmul.f32 %v934, 0.01
  %v986 = vmul.f32 %v937, 0.01
  %v987 = vmul.f32 %v940, 0.01
  %v988 = vmul.f32 %v943, 0.01
  %v989 = vmul.f32 %v946, 0.01
  %v990 = vmul.f32 %v949, 0.01
  %v991 = vmul.f32 %v952, 0.01
  %v992 = vmul.f32 %v955, 0.01
  %v993 = vmul.f32 %v958, 0.01
  %v994 = vmul.f32 %v961, 0.01
  %v995 = vmax.f32 %v868, %v963
  %v996 = vmax.f32 %v871, %v964
  %v997 = vmax.f32 %v874, %v965
  %v998 = vmax.f32 %v877, %v966
  %v999 = vmax.f32 %v880, %v967
  %v1000 = vmax.f32 %v883, %v968
  %v1001 = vmax.f32 %v886, %v969
  %v1002 = vmax.f32 %v889, %v970
  %v1003 = vmax.f32 %v892, %v971
  %v1004 = vmax.f32 %v895, %v972
  %v1005 = vmax.f32 %v898, %v973
  %v1006 = vmax.f32 %v901, %v974
  %v1007 = vmax.f32 %v904, %v975
  %v1008 = vmax.f32 %v907, %v976
  %v1009 = vmax.f32 %v910, %v977
  %v1010 = vmax.f32 %v913, %v978
  %v1011 = vmax.f32 %v916, %v979
  %v1012 = vmax.f32 %v919, %v980
  %v1013 = vmax.f32 %v922, %v981
  %v1014 = vmax.f32 %v925, %v982
  %v1015 = vmax.f32 %v928, %v983
  %v1016 = vmax.f32 %v931, %v984
  %v1017 = vmax.f32 %v934, %v985
  %v1018 = vmax.f32 %v937, %v986
  %v1019 = vmax.f32 %v940, %v987
  %v1020 = vmax.f32 %v943, %v988
  %v1021 = vmax.f32 %v946, %v989
  %v1022 = vmax.f32 %v949, %v990
  %v1023 = vmax.f32 %v952, %v991
  %v1024 = vmax.f32 %v955, %v992
  %v1025 = vmax.f32 %v958, %v993
  %v1026 = vmax.f32 %v961, %v994
  %v1027 = vsub.f32 %v1011, %v995
  %v1028 = vsub.f32 %v1012, %v996
  %v1029 = vsub.f32 %v1013, %v997
  %v1030 = vsub.f32 %v1014, %v998
  %v1031 = vsub.f32 %v1015, %v999
  %v1032 = vsub.f32 %v1016, %v1000
  %v1033 = vsub.f32 %v1017, %v1001
  %v1034 = vsub.f32 %v1018, %v1002
  %v1035 = vsub.f32 %v1019, %v1003
  %v1036 = vsub.f32 %v1020, %v1004
  %v1037 = vsub.f32 %v1021, %v1005
  %v1038 = vsub.f32 %v1022, %v1006
  %v1039 = vsub.f32 %v1023, %v1007
  %v1040 = vsub.f32 %v1024, %v1008
  %v1041 = vsub.f32 %v1025, %v1009
  %v1042 = vsub.f32 %v1026, %v1010
  %v1043 = vld [vmem:[%s6] sm:$0x1]
  %v1045 = vperm.slane %v1043, 0
  %v1047 = vmul.f32 %v1027, %v1045
  %v1048 = vmul.f32 %v1028, %v1045
  %v1049 = vmul.f32 %v1029, %v1045
  %v1050 = vmul.f32 %v1030, %v1045
  %v1051 = vmul.f32 %v1031, %v1045
  %v1052 = vmul.f32 %v1032, %v1045
  %v1053 = vmul.f32 %v1033, %v1045
  %v1054 = vmul.f32 %v1034, %v1045
  %v1055 = vmul.f32 %v1035, %v1045
  %v1056 = vmul.f32 %v1036, %v1045
  %v1057 = vmul.f32 %v1037, %v1045
  %v1058 = vmul.f32 %v1038, %v1045
  %v1059 = vmul.f32 %v1039, %v1045
  %v1060 = vmul.f32 %v1040, %v1045
  %v1061 = vmul.f32 %v1041, %v1045
  %v1062 = vmul.f32 %v1042, %v1045
  %v1063 = vand.u32 2147483647, %v1047
  %v1064 = vand.u32 2147483647, %v1048
  %v1065 = vand.u32 2147483647, %v1049
  %v1066 = vand.u32 2147483647, %v1050
  %v1067 = vand.u32 2147483647, %v1051
  %v1068 = vand.u32 2147483647, %v1052
  %v1069 = vand.u32 2147483647, %v1053
  %v1070 = vand.u32 2147483647, %v1054
  %v1071 = vand.u32 2147483647, %v1055
  %v1072 = vand.u32 2147483647, %v1056
  %v1073 = vand.u32 2147483647, %v1057
  %v1074 = vand.u32 2147483647, %v1058
  %v1075 = vand.u32 2147483647, %v1059
  %v1076 = vand.u32 2147483647, %v1060
  %v1077 = vand.u32 2147483647, %v1061
  %v1078 = vand.u32 2147483647, %v1062
  %vm1079 = vcmask 523264
  %v1080 = vsel %vm1079, %v1063, 0.0
  %1081 = vadd.xlane.f32.xlu0 %v1080
  %v1082 = vpop.xlane.xlu0 %1081
  %v1083 = vsel %vm1079, %v1064, 0.0
  %1084 = vadd.xlane.f32.xlu0 %v1083
  %v1085 = vpop.xlane.xlu0 %1084
  %v1086 = vsel %vm1079, %v1065, 0.0
  %1087 = vadd.xlane.f32.xlu0 %v1086
  %v1088 = vpop.xlane.xlu0 %1087
  %v1089 = vsel %vm1079, %v1066, 0.0
  %1090 = vadd.xlane.f32.xlu0 %v1089
  %v1091 = vpop.xlane.xlu0 %1090
  %v1092 = vsel %vm1079, %v1067, 0.0
  %1093 = vadd.xlane.f32.xlu0 %v1092
  %v1094 = vpop.xlane.xlu0 %1093
  %v1095 = vsel %vm1079, %v1068, 0.0
  %1096 = vadd.xlane.f32.xlu0 %v1095
  %v1097 = vpop.xlane.xlu0 %1096
  %v1098 = vsel %vm1079, %v1069, 0.0
  %1099 = vadd.xlane.f32.xlu0 %v1098
  %v1100 = vpop.xlane.xlu0 %1099
  %v1101 = vsel %vm1079, %v1070, 0.0
  %1102 = vadd.xlane.f32.xlu0 %v1101
  %v1103 = vpop.xlane.xlu0 %1102
  %v1104 = vsel %vm1079, %v1071, 0.0
  %1105 = vadd.xlane.f32.xlu0 %v1104
  %v1106 = vpop.xlane.xlu0 %1105
  %v1107 = vsel %vm1079, %v1072, 0.0
  %1108 = vadd.xlane.f32.xlu0 %v1107
  %v1109 = vpop.xlane.xlu0 %1108
  %v1110 = vsel %vm1079, %v1073, 0.0
  %1111 = vadd.xlane.f32.xlu0 %v1110
  %v1112 = vpop.xlane.xlu0 %1111
  %v1113 = vsel %vm1079, %v1074, 0.0
  %1114 = vadd.xlane.f32.xlu0 %v1113
  %v1115 = vpop.xlane.xlu0 %1114
  %v1116 = vsel %vm1079, %v1075, 0.0
  %1117 = vadd.xlane.f32.xlu0 %v1116
  %v1118 = vpop.xlane.xlu0 %1117
  %v1119 = vsel %vm1079, %v1076, 0.0
  %1120 = vadd.xlane.f32.xlu0 %v1119
  %v1121 = vpop.xlane.xlu0 %1120
  %v1122 = vsel %vm1079, %v1077, 0.0
  %1123 = vadd.xlane.f32.xlu0 %v1122
  %v1124 = vpop.xlane.xlu0 %1123
  %v1125 = vsel %vm1079, %v1078, 0.0
  %1126 = vadd.xlane.f32.xlu0 %v1125
  %v1127 = vpop.xlane.xlu0 %1126
  %v1128 = vadd.f32 %v685, %v1082
  %v1129 = vadd.f32 %v686, %v1085
  %v1130 = vadd.f32 %v687, %v1088
  %v1131 = vadd.f32 %v688, %v1091
  %v1132 = vadd.f32 %v689, %v1094
  %v1133 = vadd.f32 %v690, %v1097
  %v1134 = vadd.f32 %v691, %v1100
  %v1135 = vadd.f32 %v692, %v1103
  %v1136 = vadd.f32 %v693, %v1106
  %v1137 = vadd.f32 %v694, %v1109
  %v1138 = vadd.f32 %v695, %v1112
  %v1139 = vadd.f32 %v696, %v1115
  %v1140 = vadd.f32 %v697, %v1118
  %v1141 = vadd.f32 %v698, %v1121
  %v1142 = vadd.f32 %v699, %v1124
  %v1143 = vadd.f32 %v700, %v1127
  %v1144 = vld [vmem:[%s7] sm:$0xff]
  %v1145 = vld [vmem:[%s7 + $0x8] sm:$0xff]
  %v1146 = vld [vmem:[%s7 + $0x10] sm:$0xff]
  %v1147 = vld [vmem:[%s7 + $0x18] sm:$0xff]
  %v1148 = vld [vmem:[%s7 + $0x20] sm:$0xff]
  %v1149 = vld [vmem:[%s7 + $0x28] sm:$0xff]
  %v1150 = vld [vmem:[%s7 + $0x30] sm:$0xff]
  %v1151 = vld [vmem:[%s7 + $0x38] sm:$0xff]
  %v1152 = vld [vmem:[%s8] sm:$0x1]
  %v1154 = vperm.slane %v1152, 0
  %v1157 = vsel %vm1079, %v995, 0
  %v1160 = vsel %vm1079, %v996, 0
  %v1163 = vsel %vm1079, %v997, 0
  %v1166 = vsel %vm1079, %v998, 0
  %v1169 = vsel %vm1079, %v999, 0
  %v1172 = vsel %vm1079, %v1000, 0
  %v1175 = vsel %vm1079, %v1001, 0
  %v1178 = vsel %vm1079, %v1002, 0
  %v1181 = vsel %vm1079, %v1003, 0
  %v1184 = vsel %vm1079, %v1004, 0
  %v1187 = vsel %vm1079, %v1005, 0
  %v1190 = vsel %vm1079, %v1006, 0
  %v1193 = vsel %vm1079, %v1007, 0
  %v1196 = vsel %vm1079, %v1008, 0
  %v1199 = vsel %vm1079, %v1009, 0
  %v1202 = vsel %vm1079, %v1010, 0
  %v1205 = vsel %vm1079, %v1011, 0
  %v1208 = vsel %vm1079, %v1012, 0
  %v1211 = vsel %vm1079, %v1013, 0
  %v1214 = vsel %vm1079, %v1014, 0
  %v1217 = vsel %vm1079, %v1015, 0
  %v1220 = vsel %vm1079, %v1016, 0
  %v1223 = vsel %vm1079, %v1017, 0
  %v1226 = vsel %vm1079, %v1018, 0
  %v1229 = vsel %vm1079, %v1019, 0
  %v1232 = vsel %vm1079, %v1020, 0
  %v1235 = vsel %vm1079, %v1021, 0
  %v1238 = vsel %vm1079, %v1022, 0
  %v1241 = vsel %vm1079, %v1023, 0
  %v1244 = vsel %vm1079, %v1024, 0
  %v1247 = vsel %vm1079, %v1025, 0
  %v1250 = vsel %vm1079, %v1026, 0
  %1252 = vmatpush.msra.mxu0 0.0
  %1253 = vmatpush.msra.mxu0 0.0
  %1254 = vmatpush.msra.mxu0 0.0
  %1255 = vmatpush.msra.mxu0 0.0
  %1256 = vmatpush.msra.mxu0 0.0
  %1257 = vmatpush.msra.mxu0 0.0
  %1258 = vmatpush.msra.mxu0 0.0
  %1259 = vmatpush.msra.mxu0 0.0
  %1260 = vmatpush.msra.mxu0 %v1151
  %1261 = vmatpush.msra.mxu0 %v1150
  %1262 = vmatpush.msra.mxu0 %v1149
  %1263 = vmatpush.msra.mxu0 %v1148
  %1264 = vmatpush.msra.mxu0 %v1147
  %1265 = vmatpush.msra.mxu0 %v1146
  %1266 = vmatpush.msra.mxu0 %v1145
  %1267 = vmatpush.msra.mxu0 %v1144
  %1268 = vmatmul.f32.gmra.mxu0 %v1157
  %v1269 = vpop.f32.mrf.mxu0
  %v1270 = vadd.f32 %v1154, %v1269
  %1271 = vmatmul.f32.gmra.mxu0 %v1160
  %v1272 = vpop.f32.mrf.mxu0
  %v1273 = vadd.f32 %v1154, %v1272
  %1274 = vmatmul.f32.gmra.mxu0 %v1163
  %v1275 = vpop.f32.mrf.mxu0
  %v1276 = vadd.f32 %v1154, %v1275
  %1277 = vmatmul.f32.gmra.mxu0 %v1166
  %v1278 = vpop.f32.mrf.mxu0
  %v1279 = vadd.f32 %v1154, %v1278
  %1280 = vmatmul.f32.gmra.mxu0 %v1169
  %v1281 = vpop.f32.mrf.mxu0
  %v1282 = vadd.f32 %v1154, %v1281
  %1283 = vmatmul.f32.gmra.mxu0 %v1172
  %v1284 = vpop.f32.mrf.mxu0
  %v1285 = vadd.f32 %v1154, %v1284
  %1286 = vmatmul.f32.gmra.mxu0 %v1175
  %v1287 = vpop.f32.mrf.mxu0
  %v1288 = vadd.f32 %v1154, %v1287
  %1289 = vmatmul.f32.gmra.mxu0 %v1178
  %v1290 = vpop.f32.mrf.mxu0
  %v1291 = vadd.f32 %v1154, %v1290
  %1292 = vmatmul.f32.gmra.mxu0 %v1181
  %v1293 = vpop.f32.mrf.mxu0
  %v1294 = vadd.f32 %v1154, %v1293
  %1295 = vmatmul.f32.gmra.mxu0 %v1184
  %v1296 = vpop.f32.mrf.mxu0
  %v1297 = vadd.f32 %v1154, %v1296
  %1298 = vmatmul.f32.gmra.mxu0 %v1187
  %v1299 = vpop.f32.mrf.mxu0
  %v1300 = vadd.f32 %v1154, %v1299
  %1301 = vmatmul.f32.gmra.mxu0 %v1190
  %v1302 = vpop.f32.mrf.mxu0
  %v1303 = vadd.f32 %v1154, %v1302
  %1304 = vmatmul.f32.gmra.mxu0 %v1193
  %v1305 = vpop.f32.mrf.mxu0
  %v1306 = vadd.f32 %v1154, %v1305
  %1307 = vmatmul.f32.gmra.mxu0 %v1196
  %v1308 = vpop.f32.mrf.mxu0
  %v1309 = vadd.f32 %v1154, %v1308
  %1310 = vmatmul.f32.gmra.mxu0 %v1199
  %v1311 = vpop.f32.mrf.mxu0
  %v1312 = vadd.f32 %v1154, %v1311
  %1313 = vmatmul.f32.gmra.mxu0 %v1202
  %v1314 = vpop.f32.mrf.mxu0
  %v1315 = vadd.f32 %v1154, %v1314
  %1316 = vmatmul.f32.gmra.mxu0 %v1205
  %v1317 = vpop.f32.mrf.mxu0
  %v1318 = vadd.f32 %v1154, %v1317
  %1319 = vmatmul.f32.gmra.mxu0 %v1208
  %v1320 = vpop.f32.mrf.mxu0
  %v1321 = vadd.f32 %v1154, %v1320
  %1322 = vmatmul.f32.gmra.mxu0 %v1211
  %v1323 = vpop.f32.mrf.mxu0
  %v1324 = vadd.f32 %v1154, %v1323
  %1325 = vmatmul.f32.gmra.mxu0 %v1214
  %v1326 = vpop.f32.mrf.mxu0
  %v1327 = vadd.f32 %v1154, %v1326
  %1328 = vmatmul.f32.gmra.mxu0 %v1217
  %v1329 = vpop.f32.mrf.mxu0
  %v1330 = vadd.f32 %v1154, %v1329
  %1331 = vmatmul.f32.gmra.mxu0 %v1220
  %v1332 = vpop.f32.mrf.mxu0
  %v1333 = vadd.f32 %v1154, %v1332
  %1334 = vmatmul.f32.gmra.mxu0 %v1223
  %v1335 = vpop.f32.mrf.mxu0
  %v1336 = vadd.f32 %v1154, %v1335
  %1337 = vmatmul.f32.gmra.mxu0 %v1226
  %v1338 = vpop.f32.mrf.mxu0
  %v1339 = vadd.f32 %v1154, %v1338
  %1340 = vmatmul.f32.gmra.mxu0 %v1229
  %v1341 = vpop.f32.mrf.mxu0
  %v1342 = vadd.f32 %v1154, %v1341
  %1343 = vmatmul.f32.gmra.mxu0 %v1232
  %v1344 = vpop.f32.mrf.mxu0
  %v1345 = vadd.f32 %v1154, %v1344
  %1346 = vmatmul.f32.gmra.mxu0 %v1235
  %v1347 = vpop.f32.mrf.mxu0
  %v1348 = vadd.f32 %v1154, %v1347
  %1349 = vmatmul.f32.gmra.mxu0 %v1238
  %v1350 = vpop.f32.mrf.mxu0
  %v1351 = vadd.f32 %v1154, %v1350
  %1352 = vmatmul.f32.gmra.mxu0 %v1241
  %v1353 = vpop.f32.mrf.mxu0
  %v1354 = vadd.f32 %v1154, %v1353
  %1355 = vmatmul.f32.gmra.mxu0 %v1244
  %v1356 = vpop.f32.mrf.mxu0
  %v1357 = vadd.f32 %v1154, %v1356
  %1358 = vmatmul.f32.gmra.mxu0 %v1247
  %v1359 = vpop.f32.mrf.mxu0
  %v1360 = vadd.f32 %v1154, %v1359
  %1361 = vmatmul.f32.gmra.mxu0 %v1250
  %v1362 = vpop.f32.mrf.mxu0
  %v1363 = vadd.f32 %v1154, %v1362
  %1364 = vdwg.mxu0
  %v1365 = vmul.f32 %v1270, 0.01
  %v1366 = vmul.f32 %v1273, 0.01
  %v1367 = vmul.f32 %v1276, 0.01
  %v1368 = vmul.f32 %v1279, 0.01
  %v1369 = vmul.f32 %v1282, 0.01
  %v1370 = vmul.f32 %v1285, 0.01
  %v1371 = vmul.f32 %v1288, 0.01
  %v1372 = vmul.f32 %v1291, 0.01
  %v1373 = vmul.f32 %v1294, 0.01
  %v1374 = vmul.f32 %v1297, 0.01
  %v1375 = vmul.f32 %v1300, 0.01
  %v1376 = vmul.f32 %v1303, 0.01
  %v1377 = vmul.f32 %v1306, 0.01
  %v1378 = vmul.f32 %v1309, 0.01
  %v1379 = vmul.f32 %v1312, 0.01
  %v1380 = vmul.f32 %v1315, 0.01
  %v1381 = vmul.f32 %v1318, 0.01
  %v1382 = vmul.f32 %v1321, 0.01
  %v1383 = vmul.f32 %v1324, 0.01
  %v1384 = vmul.f32 %v1327, 0.01
  %v1385 = vmul.f32 %v1330, 0.01
  %v1386 = vmul.f32 %v1333, 0.01
  %v1387 = vmul.f32 %v1336, 0.01
  %v1388 = vmul.f32 %v1339, 0.01
  %v1389 = vmul.f32 %v1342, 0.01
  %v1390 = vmul.f32 %v1345, 0.01
  %v1391 = vmul.f32 %v1348, 0.01
  %v1392 = vmul.f32 %v1351, 0.01
  %v1393 = vmul.f32 %v1354, 0.01
  %v1394 = vmul.f32 %v1357, 0.01
  %v1395 = vmul.f32 %v1360, 0.01
  %v1396 = vmul.f32 %v1363, 0.01
  %v1397 = vmax.f32 %v1270, %v1365
  %v1398 = vmax.f32 %v1273, %v1366
  %v1399 = vmax.f32 %v1276, %v1367
  %v1400 = vmax.f32 %v1279, %v1368
  %v1401 = vmax.f32 %v1282, %v1369
  %v1402 = vmax.f32 %v1285, %v1370
  %v1403 = vmax.f32 %v1288, %v1371
  %v1404 = vmax.f32 %v1291, %v1372
  %v1405 = vmax.f32 %v1294, %v1373
  %v1406 = vmax.f32 %v1297, %v1374
  %v1407 = vmax.f32 %v1300, %v1375
  %v1408 = vmax.f32 %v1303, %v1376
  %v1409 = vmax.f32 %v1306, %v1377
  %v1410 = vmax.f32 %v1309, %v1378
  %v1411 = vmax.f32 %v1312, %v1379
  %v1412 = vmax.f32 %v1315, %v1380
  %v1413 = vmax.f32 %v1318, %v1381
  %v1414 = vmax.f32 %v1321, %v1382
  %v1415 = vmax.f32 %v1324, %v1383
  %v1416 = vmax.f32 %v1327, %v1384
  %v1417 = vmax.f32 %v1330, %v1385
  %v1418 = vmax.f32 %v1333, %v1386
  %v1419 = vmax.f32 %v1336, %v1387
  %v1420 = vmax.f32 %v1339, %v1388
  %v1421 = vmax.f32 %v1342, %v1389
  %v1422 = vmax.f32 %v1345, %v1390
  %v1423 = vmax.f32 %v1348, %v1391
  %v1424 = vmax.f32 %v1351, %v1392
  %v1425 = vmax.f32 %v1354, %v1393
  %v1426 = vmax.f32 %v1357, %v1394
  %v1427 = vmax.f32 %v1360, %v1395
  %v1428 = vmax.f32 %v1363, %v1396
  %v1429 = vsub.f32 %v1413, %v1397
  %v1430 = vsub.f32 %v1414, %v1398
  %v1431 = vsub.f32 %v1415, %v1399
  %v1432 = vsub.f32 %v1416, %v1400
  %v1433 = vsub.f32 %v1417, %v1401
  %v1434 = vsub.f32 %v1418, %v1402
  %v1435 = vsub.f32 %v1419, %v1403
  %v1436 = vsub.f32 %v1420, %v1404
  %v1437 = vsub.f32 %v1421, %v1405
  %v1438 = vsub.f32 %v1422, %v1406
  %v1439 = vsub.f32 %v1423, %v1407
  %v1440 = vsub.f32 %v1424, %v1408
  %v1441 = vsub.f32 %v1425, %v1409
  %v1442 = vsub.f32 %v1426, %v1410
  %v1443 = vsub.f32 %v1427, %v1411
  %v1444 = vsub.f32 %v1428, %v1412
  %v1445 = vld [vmem:[%s9] sm:$0x1]
  %v1447 = vperm.slane %v1445, 0
  %v1449 = vmul.f32 %v1429, %v1447
  %v1450 = vmul.f32 %v1430, %v1447
  %v1451 = vmul.f32 %v1431, %v1447
  %v1452 = vmul.f32 %v1432, %v1447
  %v1453 = vmul.f32 %v1433, %v1447
  %v1454 = vmul.f32 %v1434, %v1447
  %v1455 = vmul.f32 %v1435, %v1447
  %v1456 = vmul.f32 %v1436, %v1447
  %v1457 = vmul.f32 %v1437, %v1447
  %v1458 = vmul.f32 %v1438, %v1447
  %v1459 = vmul.f32 %v1439, %v1447
  %v1460 = vmul.f32 %v1440, %v1447
  %v1461 = vmul.f32 %v1441, %v1447
  %v1462 = vmul.f32 %v1442, %v1447
  %v1463 = vmul.f32 %v1443, %v1447
  %v1464 = vmul.f32 %v1444, %v1447
  %v1465 = vand.u32 2147483647, %v1449
  %v1466 = vand.u32 2147483647, %v1450
  %v1467 = vand.u32 2147483647, %v1451
  %v1468 = vand.u32 2147483647, %v1452
  %v1469 = vand.u32 2147483647, %v1453
  %v1470 = vand.u32 2147483647, %v1454
  %v1471 = vand.u32 2147483647, %v1455
  %v1472 = vand.u32 2147483647, %v1456
  %v1473 = vand.u32 2147483647, %v1457
  %v1474 = vand.u32 2147483647, %v1458
  %v1475 = vand.u32 2147483647, %v1459
  %v1476 = vand.u32 2147483647, %v1460
  %v1477 = vand.u32 2147483647, %v1461
  %v1478 = vand.u32 2147483647, %v1462
  %v1479 = vand.u32 2147483647, %v1463
  %v1480 = vand.u32 2147483647, %v1464
  %vm1481 = vcmask 130048
  %v1482 = vsel %vm1481, %v1465, 0.0
  %1483 = vadd.xlane.f32.xlu0 %v1482
  %v1484 = vpop.xlane.xlu0 %1483
  %v1485 = vsel %vm1481, %v1466, 0.0
  %1486 = vadd.xlane.f32.xlu0 %v1485
  %v1487 = vpop.xlane.xlu0 %1486
  %v1488 = vsel %vm1481, %v1467, 0.0
  %1489 = vadd.xlane.f32.xlu0 %v1488
  %v1490 = vpop.xlane.xlu0 %1489
  %v1491 = vsel %vm1481, %v1468, 0.0
  %1492 = vadd.xlane.f32.xlu0 %v1491
  %v1493 = vpop.xlane.xlu0 %1492
  %v1494 = vsel %vm1481, %v1469, 0.0
  %1495 = vadd.xlane.f32.xlu0 %v1494
  %v1496 = vpop.xlane.xlu0 %1495
  %v1497 = vsel %vm1481, %v1470, 0.0
  %1498 = vadd.xlane.f32.xlu0 %v1497
  %v1499 = vpop.xlane.xlu0 %1498
  %v1500 = vsel %vm1481, %v1471, 0.0
  %1501 = vadd.xlane.f32.xlu0 %v1500
  %v1502 = vpop.xlane.xlu0 %1501
  %v1503 = vsel %vm1481, %v1472, 0.0
  %1504 = vadd.xlane.f32.xlu0 %v1503
  %v1505 = vpop.xlane.xlu0 %1504
  %v1506 = vsel %vm1481, %v1473, 0.0
  %1507 = vadd.xlane.f32.xlu0 %v1506
  %v1508 = vpop.xlane.xlu0 %1507
  %v1509 = vsel %vm1481, %v1474, 0.0
  %1510 = vadd.xlane.f32.xlu0 %v1509
  %v1511 = vpop.xlane.xlu0 %1510
  %v1512 = vsel %vm1481, %v1475, 0.0
  %1513 = vadd.xlane.f32.xlu0 %v1512
  %v1514 = vpop.xlane.xlu0 %1513
  %v1515 = vsel %vm1481, %v1476, 0.0
  %1516 = vadd.xlane.f32.xlu0 %v1515
  %v1517 = vpop.xlane.xlu0 %1516
  %v1518 = vsel %vm1481, %v1477, 0.0
  %1519 = vadd.xlane.f32.xlu0 %v1518
  %v1520 = vpop.xlane.xlu0 %1519
  %v1521 = vsel %vm1481, %v1478, 0.0
  %1522 = vadd.xlane.f32.xlu0 %v1521
  %v1523 = vpop.xlane.xlu0 %1522
  %v1524 = vsel %vm1481, %v1479, 0.0
  %1525 = vadd.xlane.f32.xlu0 %v1524
  %v1526 = vpop.xlane.xlu0 %1525
  %v1527 = vsel %vm1481, %v1480, 0.0
  %1528 = vadd.xlane.f32.xlu0 %v1527
  %v1529 = vpop.xlane.xlu0 %1528
  %v1530 = vadd.f32 %v1128, %v1484
  %v1531 = vadd.f32 %v1129, %v1487
  %v1532 = vadd.f32 %v1130, %v1490
  %v1533 = vadd.f32 %v1131, %v1493
  %v1534 = vadd.f32 %v1132, %v1496
  %v1535 = vadd.f32 %v1133, %v1499
  %v1536 = vadd.f32 %v1134, %v1502
  %v1537 = vadd.f32 %v1135, %v1505
  %v1538 = vadd.f32 %v1136, %v1508
  %v1539 = vadd.f32 %v1137, %v1511
  %v1540 = vadd.f32 %v1138, %v1514
  %v1541 = vadd.f32 %v1139, %v1517
  %v1542 = vadd.f32 %v1140, %v1520
  %v1543 = vadd.f32 %v1141, %v1523
  %v1544 = vadd.f32 %v1142, %v1526
  %v1545 = vadd.f32 %v1143, %v1529
  %v1546 = vld [vmem:[%s10] sm:$0xff]
  %v1547 = vld [vmem:[%s10 + $0x8] sm:$0xff]
  %v1549 = vsel %vm1481, %v1429, 0
  %v1552 = vsel %vm1481, %v1430, 0
  %v1555 = vsel %vm1481, %v1431, 0
  %v1558 = vsel %vm1481, %v1432, 0
  %v1561 = vsel %vm1481, %v1433, 0
  %v1564 = vsel %vm1481, %v1434, 0
  %v1567 = vsel %vm1481, %v1435, 0
  %v1570 = vsel %vm1481, %v1436, 0
  %v1573 = vsel %vm1481, %v1437, 0
  %v1576 = vsel %vm1481, %v1438, 0
  %v1579 = vsel %vm1481, %v1439, 0
  %v1582 = vsel %vm1481, %v1440, 0
  %v1585 = vsel %vm1481, %v1441, 0
  %v1588 = vsel %vm1481, %v1442, 0
  %v1591 = vsel %vm1481, %v1443, 0
  %v1594 = vsel %vm1481, %v1444, 0
  %1596 = vmatpush.msra.mxu0 0.0
  %1597 = vmatpush.msra.mxu0 0.0
  %1598 = vmatpush.msra.mxu0 0.0
  %1599 = vmatpush.msra.mxu0 0.0
  %1600 = vmatpush.msra.mxu0 0.0
  %1601 = vmatpush.msra.mxu0 0.0
  %1602 = vmatpush.msra.mxu0 0.0
  %1603 = vmatpush.msra.mxu0 0.0
  %1604 = vmatpush.msra.mxu0 0.0
  %1605 = vmatpush.msra.mxu0 0.0
  %1606 = vmatpush.msra.mxu0 0.0
  %1607 = vmatpush.msra.mxu0 0.0
  %1608 = vmatpush.msra.mxu0 0.0
  %1609 = vmatpush.msra.mxu0 0.0
  %1610 = vmatpush.msra.mxu0 %v1547
  %1611 = vmatpush.msra.mxu0 %v1546
  %1612 = vmatmul.f32.gmra.mxu0 %v1549
  %v1613 = vpop.f32.mrf.mxu0
  %v1614 = vadd.f32 0.0, %v1613
  %1615 = vmatmul.f32.gmra.mxu0 %v1552
  %v1616 = vpop.f32.mrf.mxu0
  %v1617 = vadd.f32 0.0, %v1616
  %1618 = vmatmul.f32.gmra.mxu0 %v1555
  %v1619 = vpop.f32.mrf.mxu0
  %v1620 = vadd.f32 0.0, %v1619
  %1621 = vmatmul.f32.gmra.mxu0 %v1558
  %v1622 = vpop.f32.mrf.mxu0
  %v1623 = vadd.f32 0.0, %v1622
  %1624 = vmatmul.f32.gmra.mxu0 %v1561
  %v1625 = vpop.f32.mrf.mxu0
  %v1626 = vadd.f32 0.0, %v1625
  %1627 = vmatmul.f32.gmra.mxu0 %v1564
  %v1628 = vpop.f32.mrf.mxu0
  %v1629 = vadd.f32 0.0, %v1628
  %1630 = vmatmul.f32.gmra.mxu0 %v1567
  %v1631 = vpop.f32.mrf.mxu0
  %v1632 = vadd.f32 0.0, %v1631
  %1633 = vmatmul.f32.gmra.mxu0 %v1570
  %v1634 = vpop.f32.mrf.mxu0
  %v1635 = vadd.f32 0.0, %v1634
  %1636 = vmatmul.f32.gmra.mxu0 %v1573
  %v1637 = vpop.f32.mrf.mxu0
  %v1638 = vadd.f32 0.0, %v1637
  %1639 = vmatmul.f32.gmra.mxu0 %v1576
  %v1640 = vpop.f32.mrf.mxu0
  %v1641 = vadd.f32 0.0, %v1640
  %1642 = vmatmul.f32.gmra.mxu0 %v1579
  %v1643 = vpop.f32.mrf.mxu0
  %v1644 = vadd.f32 0.0, %v1643
  %1645 = vmatmul.f32.gmra.mxu0 %v1582
  %v1646 = vpop.f32.mrf.mxu0
  %v1647 = vadd.f32 0.0, %v1646
  %1648 = vmatmul.f32.gmra.mxu0 %v1585
  %v1649 = vpop.f32.mrf.mxu0
  %v1650 = vadd.f32 0.0, %v1649
  %1651 = vmatmul.f32.gmra.mxu0 %v1588
  %v1652 = vpop.f32.mrf.mxu0
  %v1653 = vadd.f32 0.0, %v1652
  %1654 = vmatmul.f32.gmra.mxu0 %v1591
  %v1655 = vpop.f32.mrf.mxu0
  %v1656 = vadd.f32 0.0, %v1655
  %1657 = vmatmul.f32.gmra.mxu0 %v1594
  %v1658 = vpop.f32.mrf.mxu0
  %v1659 = vadd.f32 0.0, %v1658
  %1660 = vdwg.mxu0
  %v1661 = vand.u32 2147483647, %v1614
  %v1662 = vand.u32 2147483647, %v1617
  %v1663 = vand.u32 2147483647, %v1620
  %v1664 = vand.u32 2147483647, %v1623
  %v1665 = vand.u32 2147483647, %v1626
  %v1666 = vand.u32 2147483647, %v1629
  %v1667 = vand.u32 2147483647, %v1632
  %v1668 = vand.u32 2147483647, %v1635
  %v1669 = vand.u32 2147483647, %v1638
  %v1670 = vand.u32 2147483647, %v1641
  %v1671 = vand.u32 2147483647, %v1644
  %v1672 = vand.u32 2147483647, %v1647
  %v1673 = vand.u32 2147483647, %v1650
  %v1674 = vand.u32 2147483647, %v1653
  %v1675 = vand.u32 2147483647, %v1656
  %v1676 = vand.u32 2147483647, %v1659
  %vm1677 = vcmask 31744
  %v1678 = vsel %vm1677, %v1661, 0.0
  %1679 = vadd.xlane.f32.xlu0 %v1678
  %v1680 = vpop.xlane.xlu0 %1679
  %v1681 = vsel %vm1677, %v1662, 0.0
  %1682 = vadd.xlane.f32.xlu0 %v1681
  %v1683 = vpop.xlane.xlu0 %1682
  %v1684 = vsel %vm1677, %v1663, 0.0
  %1685 = vadd.xlane.f32.xlu0 %v1684
  %v1686 = vpop.xlane.xlu0 %1685
  %v1687 = vsel %vm1677, %v1664, 0.0
  %1688 = vadd.xlane.f32.xlu0 %v1687
  %v1689 = vpop.xlane.xlu0 %1688
  %v1690 = vsel %vm1677, %v1665, 0.0
  %1691 = vadd.xlane.f32.xlu0 %v1690
  %v1692 = vpop.xlane.xlu0 %1691
  %v1693 = vsel %vm1677, %v1666, 0.0
  %1694 = vadd.xlane.f32.xlu0 %v1693
  %v1695 = vpop.xlane.xlu0 %1694
  %v1696 = vsel %vm1677, %v1667, 0.0
  %1697 = vadd.xlane.f32.xlu0 %v1696
  %v1698 = vpop.xlane.xlu0 %1697
  %v1699 = vsel %vm1677, %v1668, 0.0
  %1700 = vadd.xlane.f32.xlu0 %v1699
  %v1701 = vpop.xlane.xlu0 %1700
  %v1702 = vsel %vm1677, %v1669, 0.0
  %1703 = vadd.xlane.f32.xlu0 %v1702
  %v1704 = vpop.xlane.xlu0 %1703
  %v1705 = vsel %vm1677, %v1670, 0.0
  %1706 = vadd.xlane.f32.xlu0 %v1705
  %v1707 = vpop.xlane.xlu0 %1706
  %v1708 = vsel %vm1677, %v1671, 0.0
  %1709 = vadd.xlane.f32.xlu0 %v1708
  %v1710 = vpop.xlane.xlu0 %1709
  %v1711 = vsel %vm1677, %v1672, 0.0
  %1712 = vadd.xlane.f32.xlu0 %v1711
  %v1713 = vpop.xlane.xlu0 %1712
  %v1714 = vsel %vm1677, %v1673, 0.0
  %1715 = vadd.xlane.f32.xlu0 %v1714
  %v1716 = vpop.xlane.xlu0 %1715
  %v1717 = vsel %vm1677, %v1674, 0.0
  %1718 = vadd.xlane.f32.xlu0 %v1717
  %v1719 = vpop.xlane.xlu0 %1718
  %v1720 = vsel %vm1677, %v1675, 0.0
  %1721 = vadd.xlane.f32.xlu0 %v1720
  %v1722 = vpop.xlane.xlu0 %1721
  %v1723 = vsel %vm1677, %v1676, 0.0
  %1724 = vadd.xlane.f32.xlu0 %v1723
  %v1725 = vpop.xlane.xlu0 %1724
  %v1726 = vadd.f32 %v1530, %v1680
  %v1727 = vadd.f32 %v1531, %v1683
  %v1728 = vadd.f32 %v1532, %v1686
  %v1729 = vadd.f32 %v1533, %v1689
  %v1730 = vadd.f32 %v1534, %v1692
  %v1731 = vadd.f32 %v1535, %v1695
  %v1732 = vadd.f32 %v1536, %v1698
  %v1733 = vadd.f32 %v1537, %v1701
  %v1734 = vadd.f32 %v1538, %v1704
  %v1735 = vadd.f32 %v1539, %v1707
  %v1736 = vadd.f32 %v1540, %v1710
  %v1737 = vadd.f32 %v1541, %v1713
  %v1738 = vadd.f32 %v1542, %v1716
  %v1739 = vadd.f32 %v1543, %v1719
  %v1740 = vadd.f32 %v1544, %v1722
  %v1741 = vadd.f32 %v1545, %v1725
  %vm1742 = vcmask 7168
  %1743 = vst.msk [vmem:[%s11] sm:$0xff] %vm1742, %v1726
  %1744 = vst.msk [vmem:[%s11 + $0x8] sm:$0xff] %vm1742, %v1727
  %1745 = vst.msk [vmem:[%s11 + $0x10] sm:$0xff] %vm1742, %v1728
  %1746 = vst.msk [vmem:[%s11 + $0x18] sm:$0xff] %vm1742, %v1729
  %1747 = vst.msk [vmem:[%s11 + $0x20] sm:$0xff] %vm1742, %v1730
  %1748 = vst.msk [vmem:[%s11 + $0x28] sm:$0xff] %vm1742, %v1731
  %1749 = vst.msk [vmem:[%s11 + $0x30] sm:$0xff] %vm1742, %v1732
  %1750 = vst.msk [vmem:[%s11 + $0x38] sm:$0xff] %vm1742, %v1733
  %1751 = vst.msk [vmem:[%s11 + $0x40] sm:$0xff] %vm1742, %v1734
  %1752 = vst.msk [vmem:[%s11 + $0x48] sm:$0xff] %vm1742, %v1735
  %1753 = vst.msk [vmem:[%s11 + $0x50] sm:$0xff] %vm1742, %v1736
  %1754 = vst.msk [vmem:[%s11 + $0x58] sm:$0xff] %vm1742, %v1737
  %1755 = vst.msk [vmem:[%s11 + $0x60] sm:$0xff] %vm1742, %v1738
  %1756 = vst.msk [vmem:[%s11 + $0x68] sm:$0xff] %vm1742, %v1739
  %1757 = vst.msk [vmem:[%s11 + $0x70] sm:$0xff] %vm1742, %v1740
  %1758 = vst.msk [vmem:[%s11 + $0x78] sm:$0xff] %vm1742, %v1741
  // Predicated region
  $region46: #{tpu_custom_call.1} parent=0 // pred_check
    _
  $region47: #{tpu_custom_call.1} parent=0 // pred_check_branch
    %1760 = sbr.rel (0) target = $region49
  $region48: #{tpu_custom_call.1} parent=0 // pred_region
    _
  $region49: #{tpu_custom_call.1} parent=0 // pred_fallthru
    _
  // Predicated region
  $region50: #{tpu_custom_call.1} parent=0 // pred_check
    _
  $region51: #{tpu_custom_call.1} parent=0 // pred_check_branch
    %1762 = sbr.rel (0) target = $region53
  $region52: #{tpu_custom_call.1} parent=0 // pred_region
    _
  $region53: #{tpu_custom_call.1} parent=0 // pred_fallthru
    _

</llo_original>
